<compile_context>
chip_gen: v6e
topology: v6e:2x2x1
jax: 0.10.0
libtpu: 0.0.40
codegen_flags: <defaults>
</compile_context>

<pallas_src>
import functools

import jax
import jax.numpy as jnp
from jax.experimental import pallas as pl
from jax.experimental.pallas import tpu as pltpu


# --------------------------------------------------------------------------
# Fused RB kernel: one grid step == one image, everything resident in VMEM.
# --------------------------------------------------------------------------
def _rb_kernel(xp_ref, mask_ref,
               w1a_ref, b1a_ref, w1b_ref, b1b_ref,
               w2a_ref, b2a_ref, w2b_ref, b2b_ref,
               wr_ref, br_ref, o_ref, *, Hp, Wp):
    # xp_ref  : (C, Np)   padded-frame input, Np = Hp*Wp, zero ring
    # mask_ref: (1, Np)   1.0 at interior pixels, 0.0 on the pad ring
    # wXX_ref : (Cout, 9*Cin)  3x3 taps row-major (dy, dx, ci) on the K axis
    # wr_ref  : (C, 3C)   1x1 reduce weight (transposed)
    # bXX_ref : (Cout, 1)
    # o_ref   : (C, Np)   padded-frame output (interior extracted by wrapper)
    Np = Hp * Wp
    S = Wp + 1            # margin so every tap shift is a static in-bounds slice

    mask = mask_ref[...]                          # (1, Np)
    xf = xp_ref[...].astype(jnp.float32)          # (C, Np)

    def conv3x3(frame, w_t, b):
        """3x3 'same' conv in padded-frame layout as a single matmul.

        frame: (Cin, Np) with zero ring.  Returns (Cout, Np); ring entries are
        garbage and must be masked by the caller before reuse as a conv input.
        """
        cin = frame.shape[0]
        zpad = jnp.zeros((cin, S), jnp.float32)
        ext = jnp.concatenate([zpad, frame, zpad], axis=1)     # (Cin, Np + 2S)
        taps = []
        for dy in range(3):
            for dx in range(3):
                start = S + (dy - 1) * Wp + (dx - 1)           # in [0, 2S]
                taps.append(ext[:, start:start + Np])          # (Cin, Np)
        patch = jnp.concatenate(taps, axis=0)                  # (9*Cin, Np)
        return jnp.dot(w_t, patch, preferred_element_type=jnp.float32) + b

    # op1: conv3x3(C->C) -> ReLU -> conv3x3(C->C)
    h = mask * jnp.maximum(conv3x3(xf, w1a_ref[...], b1a_ref[...]), 0.0)
    x1 = mask * conv3x3(h, w1b_ref[...], b1b_ref[...])

    # op2 on cat([x, x1], channel): concat stays in VMEM (never hits HBM)
    x01 = jnp.concatenate([xf, x1], axis=0)                    # (2C, Np)
    h2 = mask * jnp.maximum(conv3x3(x01, w2a_ref[...], b2a_ref[...]), 0.0)
    x2 = mask * conv3x3(h2, w2b_ref[...], b2b_ref[...])

    # 1x1 reduce over cat([x, x1, x2]) + residual: one K=3C matmul, fused add
    cat = jnp.concatenate([xf, x1, x2], axis=0)                # (3C, Np)
    out = (jnp.dot(wr_ref[...], cat, preferred_element_type=jnp.float32)
           + br_ref[...] + xf)
    o_ref[...] = out.astype(o_ref.dtype)


# --------------------------------------------------------------------------
# RB forward (NCHW in / NCHW out, matching the PyTorch module).
# --------------------------------------------------------------------------
def init_rb_params(key, C, dtype=jnp.float32):
    ks = jax.random.split(key, 10)
    s = 0.1
    return dict(
        w1a=s * jax.random.normal(ks[0], (3, 3, C, C), dtype),
        b1a=s * jax.random.normal(ks[1], (C,), dtype),
        w1b=s * jax.random.normal(ks[2], (3, 3, C, C), dtype),
        b1b=s * jax.random.normal(ks[3], (C,), dtype),
        w2a=s * jax.random.normal(ks[4], (3, 3, 2 * C, C), dtype),
        b2a=s * jax.random.normal(ks[5], (C,), dtype),
        w2b=s * jax.random.normal(ks[6], (3, 3, C, C), dtype),
        b2b=s * jax.random.normal(ks[7], (C,), dtype),
        wr=s * jax.random.normal(ks[8], (3 * C, C), dtype),
        br=s * jax.random.normal(ks[9], (C,), dtype),
    )


def _conv_wt(w_hwio):
    # (3,3,Cin,Cout) -> (Cout, 9*Cin), K axis row-major over (dy, dx, ci)
    cin, cout = w_hwio.shape[2], w_hwio.shape[3]
    return w_hwio.reshape(9 * cin, cout).T


@jax.jit
def rb_forward(x_nchw, params):
    B, C, H, W = x_nchw.shape
    Hp, Wp = H + 2, W + 2
    Np = Hp * Wp

    # One boundary pad for the whole block (vs. one per conv before); all
    # intermediate activations stay inside the single fused kernel.
    xp = jnp.pad(x_nchw, ((0, 0), (0, 0), (1, 1), (1, 1))).reshape(B, C, Np)

    # Interior mask in the padded frame.
    yy, xx = jnp.meshgrid(jnp.arange(Hp), jnp.arange(Wp), indexing="ij")
    interior = (yy >= 1) & (yy <= H) & (xx >= 1) & (xx <= W)
    mask = interior.astype(x_nchw.dtype).reshape(1, Np)

    w1a_t, w1b_t = _conv_wt(params["w1a"]), _conv_wt(params["w1b"])
    w2a_t, w2b_t = _conv_wt(params["w2a"]), _conv_wt(params["w2b"])
    wr_t = params["wr"].T                                     # (C, 3C)
    b1a2 = params["b1a"].reshape(C, 1)
    b1b2 = params["b1b"].reshape(C, 1)
    b2a2 = params["b2a"].reshape(C, 1)
    b2b2 = params["b2b"].reshape(C, 1)
    br2 = params["br"].reshape(C, 1)

    kernel = functools.partial(_rb_kernel, Hp=Hp, Wp=Wp)
    rep2 = lambda n: (0, 0)                                   # replicated 2-D operands

    out_frame = pl.pallas_call(
        kernel,
        out_shape=jax.ShapeDtypeStruct((B, C, Np), x_nchw.dtype),
        grid=(B,),
        in_specs=[
            pl.BlockSpec((None, C, Np), lambda n: (n, 0, 0)),   # xp
            pl.BlockSpec((1, Np), rep2),                        # mask
            pl.BlockSpec((C, 9 * C), rep2),                     # w1a_t
            pl.BlockSpec((C, 1), rep2),                         # b1a
            pl.BlockSpec((C, 9 * C), rep2),                     # w1b_t
            pl.BlockSpec((C, 1), rep2),                         # b1b
            pl.BlockSpec((C, 9 * 2 * C), rep2),                 # w2a_t
            pl.BlockSpec((C, 1), rep2),                         # b2a
            pl.BlockSpec((C, 9 * C), rep2),                     # w2b_t
            pl.BlockSpec((C, 1), rep2),                         # b2b
            pl.BlockSpec((C, 3 * C), rep2),                     # wr_t
            pl.BlockSpec((C, 1), rep2),                         # br
        ],
        out_specs=pl.BlockSpec((None, C, Np), lambda n: (n, 0, 0)),
        compiler_params=pltpu.CompilerParams(
            dimension_semantics=("parallel",)),                 # 1 image / TC on v7x
    )(xp, mask, w1a_t, b1a2, w1b_t, b1b2, w2a_t, b2a2, w2b_t, b2b2, wr_t, br2)

    # Extract the interior of the padded frame -> NCHW output (cheap XLA slice).
    out = out_frame.reshape(B, C, Hp, Wp)[:, :, 1:H + 1, 1:W + 1]
    return out


# --------------------------------------------------------------------------
# Pure-JAX reference (lax conv) for a correctness check.
# --------------------------------------------------------------------------
def _conv3x3_ref(x, w, b, relu):
    y = jax.lax.conv_general_dilated(
        x, w, window_strides=(1, 1), padding="SAME",
        dimension_numbers=("NHWC", "HWIO", "NHWC")) + b
    return jnp.maximum(y, 0.0) if relu else y


def rb_forward_ref(x_nchw, p):
    x = jnp.transpose(x_nchw, (0, 2, 3, 1))
    x1 = _conv3x3_ref(_conv3x3_ref(x, p["w1a"], p["b1a"], True),
                      p["w1b"], p["b1b"], False)
    x2 = _conv3x3_ref(
        _conv3x3_ref(jnp.concatenate([x, x1], -1), p["w2a"], p["b2a"], True),
        p["w2b"], p["b2b"], False)
    cat = jnp.concatenate([x, x1, x2], -1)
    out = jnp.einsum("nhwi,io->nhwo", cat, p["wr"]) + p["br"] + x
    return jnp.transpose(out, (0, 3, 1, 2))


if __name__ == "__main__":
    key = jax.random.PRNGKey(0)
    kx, kp = jax.random.split(key)
    B, C, H, W = 2, 4, 16, 16
    x = jax.random.normal(kx, (B, C, H, W), jnp.float32)
    params = init_rb_params(kp, C)

    out = rb_forward(x, params)
    out = jax.block_until_ready(out)

    ref = rb_forward_ref(x, params)
    assert out.shape == (B, C, H, W)
    assert jnp.allclose(out, ref, rtol=1e-3, atol=1e-3), "mismatch vs reference"
    print("KERNEL_OK")
</pallas_src>

<mosaic_0001>
module attributes {stable_mosaic.version = 11 : i64} {
  func.func @_rb_kernel(%arg0: i32, %arg1: memref<1x4x324xf32, #tpu.memory_space<vmem>>, %arg2: memref<1x324xf32, #tpu.memory_space<vmem>>, %arg3: memref<4x36xf32, #tpu.memory_space<vmem>>, %arg4: memref<4x1xf32, #tpu.memory_space<vmem>>, %arg5: memref<4x36xf32, #tpu.memory_space<vmem>>, %arg6: memref<4x1xf32, #tpu.memory_space<vmem>>, %arg7: memref<4x72xf32, #tpu.memory_space<vmem>>, %arg8: memref<4x1xf32, #tpu.memory_space<vmem>>, %arg9: memref<4x36xf32, #tpu.memory_space<vmem>>, %arg10: memref<4x1xf32, #tpu.memory_space<vmem>>, %arg11: memref<4x12xf32, #tpu.memory_space<vmem>>, %arg12: memref<4x1xf32, #tpu.memory_space<vmem>>, %arg13: memref<1x4x324xf32, #tpu.memory_space<vmem>>) attributes {dimension_semantics = [#tpu.dimension_semantics<parallel>], iteration_bounds = array<i64: 2>, scalar_prefetch = 0 : i64, scratch_operands = 0 : i64, tpu.core_type = #tpu.core_type<tc>, window_params = [{transform_indices = @transform_0, window_bounds = array<i64: 1, 4, 324>}, {pipeline_mode = #tpu.pipeline_mode<synchronous>, transform_indices = @transform_1, window_bounds = array<i64: 1, 324>}, {pipeline_mode = #tpu.pipeline_mode<synchronous>, transform_indices = @transform_2, window_bounds = array<i64: 4, 36>}, {pipeline_mode = #tpu.pipeline_mode<synchronous>, transform_indices = @transform_3, window_bounds = array<i64: 4, 1>}, {pipeline_mode = #tpu.pipeline_mode<synchronous>, transform_indices = @transform_4, window_bounds = array<i64: 4, 36>}, {pipeline_mode = #tpu.pipeline_mode<synchronous>, transform_indices = @transform_5, window_bounds = array<i64: 4, 1>}, {pipeline_mode = #tpu.pipeline_mode<synchronous>, transform_indices = @transform_6, window_bounds = array<i64: 4, 72>}, {pipeline_mode = #tpu.pipeline_mode<synchronous>, transform_indices = @transform_7, window_bounds = array<i64: 4, 1>}, {pipeline_mode = #tpu.pipeline_mode<synchronous>, transform_indices = @transform_8, window_bounds = array<i64: 4, 36>}, {pipeline_mode = #tpu.pipeline_mode<synchronous>, transform_indices = @transform_9, window_bounds = array<i64: 4, 1>}, {pipeline_mode = #tpu.pipeline_mode<synchronous>, transform_indices = @transform_10, window_bounds = array<i64: 4, 12>}, {pipeline_mode = #tpu.pipeline_mode<synchronous>, transform_indices = @transform_11, window_bounds = array<i64: 4, 1>}, {transform_indices = @transform_12, window_bounds = array<i64: 1, 4, 324>}]} {
    %c0 = arith.constant 0 : index
    %c0_0 = arith.constant 0 : index
    %0 = vector.load %arg2[%c0, %c0_0] : memref<1x324xf32, #tpu.memory_space<vmem>>, vector<1x324xf32>
    %c0_1 = arith.constant 0 : index
    %c0_2 = arith.constant 0 : index
    %c0_3 = arith.constant 0 : index
    %1 = vector.load %arg1[%c0_1, %c0_2, %c0_3] : memref<1x4x324xf32, #tpu.memory_space<vmem>>, vector<1x4x324xf32>
    %2 = vector.shape_cast %1 : vector<1x4x324xf32> to vector<4x324xf32>
    %c0_4 = arith.constant 0 : index
    %c0_5 = arith.constant 0 : index
    %3 = vector.load %arg3[%c0_4, %c0_5] : memref<4x36xf32, #tpu.memory_space<vmem>>, vector<4x36xf32>
    %c0_6 = arith.constant 0 : index
    %c0_7 = arith.constant 0 : index
    %4 = vector.load %arg4[%c0_6, %c0_7] : memref<4x1xf32, #tpu.memory_space<vmem>>, vector<4x1xf32>
    %cst = arith.constant 0.000000e+00 : f32
    %5 = vector.broadcast %cst : f32 to vector<4x19xf32>
    %6 = tpu.concatenate %5, %2, %5 in 1 : vector<4x19xf32>, vector<4x324xf32>, vector<4x19xf32> -> vector<4x362xf32>
    %7 = vector.extract_strided_slice %6 {offsets = [0, 0], sizes = [4, 324], strides = [1, 1]} : vector<4x362xf32> to vector<4x324xf32>
    %8 = vector.extract_strided_slice %6 {offsets = [0, 1], sizes = [4, 324], strides = [1, 1]} : vector<4x362xf32> to vector<4x324xf32>
    %9 = vector.extract_strided_slice %6 {offsets = [0, 2], sizes = [4, 324], strides = [1, 1]} : vector<4x362xf32> to vector<4x324xf32>
    %10 = vector.extract_strided_slice %6 {offsets = [0, 18], sizes = [4, 324], strides = [1, 1]} : vector<4x362xf32> to vector<4x324xf32>
    %11 = vector.extract_strided_slice %6 {offsets = [0, 19], sizes = [4, 324], strides = [1, 1]} : vector<4x362xf32> to vector<4x324xf32>
    %12 = vector.extract_strided_slice %6 {offsets = [0, 20], sizes = [4, 324], strides = [1, 1]} : vector<4x362xf32> to vector<4x324xf32>
    %13 = vector.extract_strided_slice %6 {offsets = [0, 36], sizes = [4, 324], strides = [1, 1]} : vector<4x362xf32> to vector<4x324xf32>
    %14 = vector.extract_strided_slice %6 {offsets = [0, 37], sizes = [4, 324], strides = [1, 1]} : vector<4x362xf32> to vector<4x324xf32>
    %15 = vector.extract_strided_slice %6 {offsets = [0, 38], sizes = [4, 324], strides = [1, 1]} : vector<4x362xf32> to vector<4x324xf32>
    %16 = tpu.concatenate %7, %8, %9, %10, %11, %12, %13, %14, %15 in 0 : vector<4x324xf32>, vector<4x324xf32>, vector<4x324xf32>, vector<4x324xf32>, vector<4x324xf32>, vector<4x324xf32>, vector<4x324xf32>, vector<4x324xf32>, vector<4x324xf32> -> vector<36x324xf32>
    %cst_8 = arith.constant dense<0.000000e+00> : vector<4x324xf32>
    %17 = tpu.matmul %3, %16, %cst_8 {dimension_numbers = #tpu.dot_dimension_numbers<[1], [0], [0], [1], [0, 0, 1, 1], [], []>} : vector<4x36xf32>, vector<36x324xf32>, vector<4x324xf32> -> vector<4x324xf32>
    %18 = vector.broadcast %4 : vector<4x1xf32> to vector<4x324xf32>
    %19 = arith.addf %17, %18 : vector<4x324xf32>
    %cst_9 = arith.constant 0.000000e+00 : f32
    %20 = vector.broadcast %cst_9 : f32 to vector<4x324xf32>
    %21 = arith.maximumf %19, %20 : vector<4x324xf32>
    %22 = vector.broadcast %0 : vector<1x324xf32> to vector<4x324xf32>
    %23 = arith.mulf %22, %21 : vector<4x324xf32>
    %c0_10 = arith.constant 0 : index
    %c0_11 = arith.constant 0 : index
    %24 = vector.load %arg5[%c0_10, %c0_11] : memref<4x36xf32, #tpu.memory_space<vmem>>, vector<4x36xf32>
    %c0_12 = arith.constant 0 : index
    %c0_13 = arith.constant 0 : index
    %25 = vector.load %arg6[%c0_12, %c0_13] : memref<4x1xf32, #tpu.memory_space<vmem>>, vector<4x1xf32>
    %cst_14 = arith.constant 0.000000e+00 : f32
    %26 = vector.broadcast %cst_14 : f32 to vector<4x19xf32>
    %27 = tpu.concatenate %26, %23, %26 in 1 : vector<4x19xf32>, vector<4x324xf32>, vector<4x19xf32> -> vector<4x362xf32>
    %28 = vector.extract_strided_slice %27 {offsets = [0, 0], sizes = [4, 324], strides = [1, 1]} : vector<4x362xf32> to vector<4x324xf32>
    %29 = vector.extract_strided_slice %27 {offsets = [0, 1], sizes = [4, 324], strides = [1, 1]} : vector<4x362xf32> to vector<4x324xf32>
    %30 = vector.extract_strided_slice %27 {offsets = [0, 2], sizes = [4, 324], strides = [1, 1]} : vector<4x362xf32> to vector<4x324xf32>
    %31 = vector.extract_strided_slice %27 {offsets = [0, 18], sizes = [4, 324], strides = [1, 1]} : vector<4x362xf32> to vector<4x324xf32>
    %32 = vector.extract_strided_slice %27 {offsets = [0, 19], sizes = [4, 324], strides = [1, 1]} : vector<4x362xf32> to vector<4x324xf32>
    %33 = vector.extract_strided_slice %27 {offsets = [0, 20], sizes = [4, 324], strides = [1, 1]} : vector<4x362xf32> to vector<4x324xf32>
    %34 = vector.extract_strided_slice %27 {offsets = [0, 36], sizes = [4, 324], strides = [1, 1]} : vector<4x362xf32> to vector<4x324xf32>
    %35 = vector.extract_strided_slice %27 {offsets = [0, 37], sizes = [4, 324], strides = [1, 1]} : vector<4x362xf32> to vector<4x324xf32>
    %36 = vector.extract_strided_slice %27 {offsets = [0, 38], sizes = [4, 324], strides = [1, 1]} : vector<4x362xf32> to vector<4x324xf32>
    %37 = tpu.concatenate %28, %29, %30, %31, %32, %33, %34, %35, %36 in 0 : vector<4x324xf32>, vector<4x324xf32>, vector<4x324xf32>, vector<4x324xf32>, vector<4x324xf32>, vector<4x324xf32>, vector<4x324xf32>, vector<4x324xf32>, vector<4x324xf32> -> vector<36x324xf32>
    %cst_15 = arith.constant dense<0.000000e+00> : vector<4x324xf32>
    %38 = tpu.matmul %24, %37, %cst_15 {dimension_numbers = #tpu.dot_dimension_numbers<[1], [0], [0], [1], [0, 0, 1, 1], [], []>} : vector<4x36xf32>, vector<36x324xf32>, vector<4x324xf32> -> vector<4x324xf32>
    %39 = vector.broadcast %25 : vector<4x1xf32> to vector<4x324xf32>
    %40 = arith.addf %38, %39 : vector<4x324xf32>
    %41 = vector.broadcast %0 : vector<1x324xf32> to vector<4x324xf32>
    %42 = arith.mulf %41, %40 : vector<4x324xf32>
    %43 = tpu.concatenate %2, %42 in 0 : vector<4x324xf32>, vector<4x324xf32> -> vector<8x324xf32>
    %c0_16 = arith.constant 0 : index
    %c0_17 = arith.constant 0 : index
    %44 = vector.load %arg7[%c0_16, %c0_17] : memref<4x72xf32, #tpu.memory_space<vmem>>, vector<4x72xf32>
    %c0_18 = arith.constant 0 : index
    %c0_19 = arith.constant 0 : index
    %45 = vector.load %arg8[%c0_18, %c0_19] : memref<4x1xf32, #tpu.memory_space<vmem>>, vector<4x1xf32>
    %cst_20 = arith.constant 0.000000e+00 : f32
    %46 = vector.broadcast %cst_20 : f32 to vector<8x19xf32>
    %47 = tpu.concatenate %46, %43, %46 in 1 : vector<8x19xf32>, vector<8x324xf32>, vector<8x19xf32> -> vector<8x362xf32>
    %48 = vector.extract_strided_slice %47 {offsets = [0, 0], sizes = [8, 324], strides = [1, 1]} : vector<8x362xf32> to vector<8x324xf32>
    %49 = vector.extract_strided_slice %47 {offsets = [0, 1], sizes = [8, 324], strides = [1, 1]} : vector<8x362xf32> to vector<8x324xf32>
    %50 = vector.extract_strided_slice %47 {offsets = [0, 2], sizes = [8, 324], strides = [1, 1]} : vector<8x362xf32> to vector<8x324xf32>
    %51 = vector.extract_strided_slice %47 {offsets = [0, 18], sizes = [8, 324], strides = [1, 1]} : vector<8x362xf32> to vector<8x324xf32>
    %52 = vector.extract_strided_slice %47 {offsets = [0, 19], sizes = [8, 324], strides = [1, 1]} : vector<8x362xf32> to vector<8x324xf32>
    %53 = vector.extract_strided_slice %47 {offsets = [0, 20], sizes = [8, 324], strides = [1, 1]} : vector<8x362xf32> to vector<8x324xf32>
    %54 = vector.extract_strided_slice %47 {offsets = [0, 36], sizes = [8, 324], strides = [1, 1]} : vector<8x362xf32> to vector<8x324xf32>
    %55 = vector.extract_strided_slice %47 {offsets = [0, 37], sizes = [8, 324], strides = [1, 1]} : vector<8x362xf32> to vector<8x324xf32>
    %56 = vector.extract_strided_slice %47 {offsets = [0, 38], sizes = [8, 324], strides = [1, 1]} : vector<8x362xf32> to vector<8x324xf32>
    %57 = tpu.concatenate %48, %49, %50, %51, %52, %53, %54, %55, %56 in 0 : vector<8x324xf32>, vector<8x324xf32>, vector<8x324xf32>, vector<8x324xf32>, vector<8x324xf32>, vector<8x324xf32>, vector<8x324xf32>, vector<8x324xf32>, vector<8x324xf32> -> vector<72x324xf32>
    %cst_21 = arith.constant dense<0.000000e+00> : vector<4x324xf32>
    %58 = tpu.matmul %44, %57, %cst_21 {dimension_numbers = #tpu.dot_dimension_numbers<[1], [0], [0], [1], [0, 0, 1, 1], [], []>} : vector<4x72xf32>, vector<72x324xf32>, vector<4x324xf32> -> vector<4x324xf32>
    %59 = vector.broadcast %45 : vector<4x1xf32> to vector<4x324xf32>
    %60 = arith.addf %58, %59 : vector<4x324xf32>
    %cst_22 = arith.constant 0.000000e+00 : f32
    %61 = vector.broadcast %cst_22 : f32 to vector<4x324xf32>
    %62 = arith.maximumf %60, %61 : vector<4x324xf32>
    %63 = vector.broadcast %0 : vector<1x324xf32> to vector<4x324xf32>
    %64 = arith.mulf %63, %62 : vector<4x324xf32>
    %c0_23 = arith.constant 0 : index
    %c0_24 = arith.constant 0 : index
    %65 = vector.load %arg9[%c0_23, %c0_24] : memref<4x36xf32, #tpu.memory_space<vmem>>, vector<4x36xf32>
    %c0_25 = arith.constant 0 : index
    %c0_26 = arith.constant 0 : index
    %66 = vector.load %arg10[%c0_25, %c0_26] : memref<4x1xf32, #tpu.memory_space<vmem>>, vector<4x1xf32>
    %cst_27 = arith.constant 0.000000e+00 : f32
    %67 = vector.broadcast %cst_27 : f32 to vector<4x19xf32>
    %68 = tpu.concatenate %67, %64, %67 in 1 : vector<4x19xf32>, vector<4x324xf32>, vector<4x19xf32> -> vector<4x362xf32>
    %69 = vector.extract_strided_slice %68 {offsets = [0, 0], sizes = [4, 324], strides = [1, 1]} : vector<4x362xf32> to vector<4x324xf32>
    %70 = vector.extract_strided_slice %68 {offsets = [0, 1], sizes = [4, 324], strides = [1, 1]} : vector<4x362xf32> to vector<4x324xf32>
    %71 = vector.extract_strided_slice %68 {offsets = [0, 2], sizes = [4, 324], strides = [1, 1]} : vector<4x362xf32> to vector<4x324xf32>
    %72 = vector.extract_strided_slice %68 {offsets = [0, 18], sizes = [4, 324], strides = [1, 1]} : vector<4x362xf32> to vector<4x324xf32>
    %73 = vector.extract_strided_slice %68 {offsets = [0, 19], sizes = [4, 324], strides = [1, 1]} : vector<4x362xf32> to vector<4x324xf32>
    %74 = vector.extract_strided_slice %68 {offsets = [0, 20], sizes = [4, 324], strides = [1, 1]} : vector<4x362xf32> to vector<4x324xf32>
    %75 = vector.extract_strided_slice %68 {offsets = [0, 36], sizes = [4, 324], strides = [1, 1]} : vector<4x362xf32> to vector<4x324xf32>
    %76 = vector.extract_strided_slice %68 {offsets = [0, 37], sizes = [4, 324], strides = [1, 1]} : vector<4x362xf32> to vector<4x324xf32>
    %77 = vector.extract_strided_slice %68 {offsets = [0, 38], sizes = [4, 324], strides = [1, 1]} : vector<4x362xf32> to vector<4x324xf32>
    %78 = tpu.concatenate %69, %70, %71, %72, %73, %74, %75, %76, %77 in 0 : vector<4x324xf32>, vector<4x324xf32>, vector<4x324xf32>, vector<4x324xf32>, vector<4x324xf32>, vector<4x324xf32>, vector<4x324xf32>, vector<4x324xf32>, vector<4x324xf32> -> vector<36x324xf32>
    %cst_28 = arith.constant dense<0.000000e+00> : vector<4x324xf32>
    %79 = tpu.matmul %65, %78, %cst_28 {dimension_numbers = #tpu.dot_dimension_numbers<[1], [0], [0], [1], [0, 0, 1, 1], [], []>} : vector<4x36xf32>, vector<36x324xf32>, vector<4x324xf32> -> vector<4x324xf32>
    %80 = vector.broadcast %66 : vector<4x1xf32> to vector<4x324xf32>
    %81 = arith.addf %79, %80 : vector<4x324xf32>
    %82 = vector.broadcast %0 : vector<1x324xf32> to vector<4x324xf32>
    %83 = arith.mulf %82, %81 : vector<4x324xf32>
    %84 = tpu.concatenate %2, %42, %83 in 0 : vector<4x324xf32>, vector<4x324xf32>, vector<4x324xf32> -> vector<12x324xf32>
    %c0_29 = arith.constant 0 : index
    %c0_30 = arith.constant 0 : index
    %85 = vector.load %arg11[%c0_29, %c0_30] : memref<4x12xf32, #tpu.memory_space<vmem>>, vector<4x12xf32>
    %cst_31 = arith.constant dense<0.000000e+00> : vector<4x324xf32>
    %86 = tpu.matmul %85, %84, %cst_31 {dimension_numbers = #tpu.dot_dimension_numbers<[1], [0], [0], [1], [0, 0, 1, 1], [], []>} : vector<4x12xf32>, vector<12x324xf32>, vector<4x324xf32> -> vector<4x324xf32>
    %c0_32 = arith.constant 0 : index
    %c0_33 = arith.constant 0 : index
    %87 = vector.load %arg12[%c0_32, %c0_33] : memref<4x1xf32, #tpu.memory_space<vmem>>, vector<4x1xf32>
    %88 = vector.broadcast %87 : vector<4x1xf32> to vector<4x324xf32>
    %89 = arith.addf %86, %88 : vector<4x324xf32>
    %90 = arith.addf %89, %2 : vector<4x324xf32>
    %c0_34 = arith.constant 0 : index
    %c0_35 = arith.constant 0 : index
    %c0_36 = arith.constant 0 : index
    %91 = vector.load %arg13[%c0_34, %c0_35, %c0_36] : memref<1x4x324xf32, #tpu.memory_space<vmem>>, vector<1x4x324xf32>
    %92 = vector.shape_cast %91 : vector<1x4x324xf32> to vector<4x324xf32>
    %93 = vector.shape_cast %90 : vector<4x324xf32> to vector<1x4x324xf32>
    tpu.vector_store %arg13[%c0_34, %c0_35, %c0_36], %93 {strides = array<i32>} : memref<1x4x324xf32, #tpu.memory_space<vmem>>, vector<1x4x324xf32>,
    return
  }
  func.func @transform_0(%arg0: i32) -> (i32, i32, i32) {
    %c0_i32 = arith.constant 0 : i32
    %c0_i32_0 = arith.constant 0 : i32
    %c0_i32_1 = arith.constant 0 : i32
    return %arg0, %c0_i32, %c0_i32_0 : i32, i32, i32
  }
  func.func @transform_1(%arg0: i32) -> (i32, i32) {
    %c0_i32 = arith.constant 0 : i32
    %c0_i32_0 = arith.constant 0 : i32
    %c0_i32_1 = arith.constant 0 : i32
    return %c0_i32, %c0_i32_0 : i32, i32
  }
  func.func @transform_2(%arg0: i32) -> (i32, i32) {
    %c0_i32 = arith.constant 0 : i32
    %c0_i32_0 = arith.constant 0 : i32
    %c0_i32_1 = arith.constant 0 : i32
    return %c0_i32, %c0_i32_0 : i32, i32
  }
  func.func @transform_3(%arg0: i32) -> (i32, i32) {
    %c0_i32 = arith.constant 0 : i32
    %c0_i32_0 = arith.constant 0 : i32
    %c0_i32_1 = arith.constant 0 : i32
    return %c0_i32, %c0_i32_0 : i32, i32
  }
  func.func @transform_4(%arg0: i32) -> (i32, i32) {
    %c0_i32 = arith.constant 0 : i32
    %c0_i32_0 = arith.constant 0 : i32
    %c0_i32_1 = arith.constant 0 : i32
    return %c0_i32, %c0_i32_0 : i32, i32
  }
  func.func @transform_5(%arg0: i32) -> (i32, i32) {
    %c0_i32 = arith.constant 0 : i32
    %c0_i32_0 = arith.constant 0 : i32
    %c0_i32_1 = arith.constant 0 : i32
    return %c0_i32, %c0_i32_0 : i32, i32
  }
  func.func @transform_6(%arg0: i32) -> (i32, i32) {
    %c0_i32 = arith.constant 0 : i32
    %c0_i32_0 = arith.constant 0 : i32
    %c0_i32_1 = arith.constant 0 : i32
    return %c0_i32, %c0_i32_0 : i32, i32
  }
  func.func @transform_7(%arg0: i32) -> (i32, i32) {
    %c0_i32 = arith.constant 0 : i32
    %c0_i32_0 = arith.constant 0 : i32
    %c0_i32_1 = arith.constant 0 : i32
    return %c0_i32, %c0_i32_0 : i32, i32
  }
  func.func @transform_8(%arg0: i32) -> (i32, i32) {
    %c0_i32 = arith.constant 0 : i32
    %c0_i32_0 = arith.constant 0 : i32
    %c0_i32_1 = arith.constant 0 : i32
    return %c0_i32, %c0_i32_0 : i32, i32
  }
  func.func @transform_9(%arg0: i32) -> (i32, i32) {
    %c0_i32 = arith.constant 0 : i32
    %c0_i32_0 = arith.constant 0 : i32
    %c0_i32_1 = arith.constant 0 : i32
    return %c0_i32, %c0_i32_0 : i32, i32
  }
  func.func @transform_10(%arg0: i32) -> (i32, i32) {
    %c0_i32 = arith.constant 0 : i32
    %c0_i32_0 = arith.constant 0 : i32
    %c0_i32_1 = arith.constant 0 : i32
    return %c0_i32, %c0_i32_0 : i32, i32
  }
  func.func @transform_11(%arg0: i32) -> (i32, i32) {
    %c0_i32 = arith.constant 0 : i32
    %c0_i32_0 = arith.constant 0 : i32
    %c0_i32_1 = arith.constant 0 : i32
    return %c0_i32, %c0_i32_0 : i32, i32
  }
  func.func @transform_12(%arg0: i32) -> (i32, i32, i32) {
    %c0_i32 = arith.constant 0 : i32
    %c0_i32_0 = arith.constant 0 : i32
    %c0_i32_1 = arith.constant 0 : i32
    return %arg0, %c0_i32, %c0_i32_0 : i32, i32, i32
  }
}

</mosaic_0001>

<llo_original>
// kernel: rb_forward.1
$region0: #{rb_forward.1}
  #allocation0 [shape = 'u32[]', space=smem, size = 0x4, offset = 0x4, fixed_abs, tag = 'smem constant byte address 0x4 - core index']
  #allocation1 [shape = 'u32[144,128]{1,0:T(1,128)}', space=vmem, size = 0x12000, scoped, tag = 'internal scratch']
  %s0 = inlined_call_operand.vmem [shape: f32[2,4,324], index: 0, kind: input, shape index: {}]
  %s1 = inlined_call_operand.vmem [shape: f32[1,324], index: 1, kind: input, shape index: {}]
  %s2 = inlined_call_operand.vmem [shape: f32[4,36], index: 2, kind: input, shape index: {}]
  %s3 = inlined_call_operand.vmem [shape: f32[4,1], index: 3, kind: input, shape index: {}]
  %s4 = inlined_call_operand.vmem [shape: f32[4,36], index: 4, kind: input, shape index: {}]
  %s5 = inlined_call_operand.vmem [shape: f32[4,1], index: 5, kind: input, shape index: {}]
  %s6 = inlined_call_operand.vmem [shape: f32[4,72], index: 6, kind: input, shape index: {}]
  %s7 = inlined_call_operand.vmem [shape: f32[4,1], index: 7, kind: input, shape index: {}]
  %s8 = inlined_call_operand.vmem [shape: f32[4,36], index: 8, kind: input, shape index: {}]
  %s9 = inlined_call_operand.vmem [shape: f32[4,1], index: 9, kind: input, shape index: {}]
  %s10 = inlined_call_operand.vmem [shape: f32[4,12], index: 10, kind: input, shape index: {}]
  %s11 = inlined_call_operand.vmem [shape: f32[4,1], index: 11, kind: input, shape index: {}]
  %s12 = inlined_call_operand.vmem [shape: f32[2,4,324], index: 12, kind: output, shape index: {}]
  %s13 = sld [smem:[#allocation0]]
  $region81: #{rb_forward.1} parent=0
    _
  %s15 = ssub.s32 1, %s13
  %s16 = scalar_select 0, %s15, %s13
  loop: start=0, step=1, limit=4
  $region2: #{rb_forward.1} parent=0 // loop_pre_header
    _
  $region3: #{rb_forward.1} parent=0 // loop_header
    %s18 = sphi 0, %s22
    %p19 = scmp.ge.s32.totalorder %s18, 4
    %s28 = sphi 0, %s30
    %s31 = sphi 0, %s28
    %s32 = sphi 0, %s31
    %s48 = sphi 0, %s32
    %s52 = sphi 0, %s52
    %s54 = sphi 0, %s52
    %s55 = sphi 0, %s54
    %s69 = sphi 0, %s55
    %s73 = sphi 0, %s73
    %s75 = sphi 0, %s73
    %s76 = sphi 0, %s75
    %s90 = sphi 0, %s76
    %s94 = sphi 0, %s94
    %s96 = sphi 0, %s94
    %s97 = sphi 0, %s96
    %s111 = sphi 0, %s97
    %s115 = sphi 0, %s115
    %s117 = sphi 0, %s115
    %s118 = sphi 0, %s117
    %s132 = sphi 0, %s118
    %s136 = sphi 0, %s136
    %s138 = sphi 0, %s136
    %s139 = sphi 0, %s138
    %s153 = sphi 0, %s139
    %s157 = sphi 0, %s157
    %s159 = sphi 0, %s157
    %s160 = sphi 0, %s159
    %s174 = sphi 0, %s160
    %s178 = sphi 0, %s178
    %s180 = sphi 0, %s178
    %s181 = sphi 0, %s180
    %s195 = sphi 0, %s181
    %s199 = sphi 0, %s199
    %s201 = sphi 0, %s199
    %s202 = sphi 0, %s201
    %s216 = sphi 0, %s202
    %s220 = sphi 0, %s220
    %s222 = sphi 0, %s220
    %s223 = sphi 0, %s222
    %s237 = sphi 0, %s223
    %s241 = sphi 0, %s241
    %s243 = sphi 0, %s241
    %s244 = sphi 0, %s243
    %s258 = sphi 0, %s244
    %s262 = sphi 0, %s262
    %s264 = sphi 0, %s262
    %s265 = sphi 0, %s264
    %s279 = sphi 0, %s265
    %s285 = sphi 0, %s287
    %s288 = sphi 0, %s285
    %s289 = sphi 0, %s288
    %s305 = sphi 0, %s289
  $region4: #{rb_forward.1} parent=0 // loop_header_branch
    %21 = sbr.rel (%p19) target = $region8
  $region5: #{rb_forward.1} parent=0 // loop_body
    %s23 = ssub.s32 %s18, 1
    %s24 = ssub.s32 %s18, 2
    %s25 = sadd.s32 %s18, 1
    %s26 = ssub.s32 %s18, %s25
    %p27 = scmp.eq.s32.totalorder %s26, 0
    %s29 = sadd.s32 %s28, 1
    %s30 = scalar_select %p27, %s28, %s29
    %p33 = pneg %p27
    %p34 = scmp.eq.s32.totalorder %s18, 1
    %p35 = por %p33, %p34
    %p36 = scmp.ne.s32.totalorder %s28, %s31
    %p37 = scmp.eq.s32.totalorder %s18, 0
    %p38 = por %p36, %p37
    %p39 = scmp.ne.s32.totalorder %s28, %s31
    %p40 = scmp.eq.s32.totalorder %s23, 1
    %p41 = por %p39, %p40
    %p42 = scmp.ne.s32.totalorder %s31, %s32
    %p43 = scmp.eq.s32.totalorder %s23, 0
    %p44 = por %p42, %p43
    %p45 = scmp.ne.s32.totalorder %s31, %s32
    %p46 = scmp.eq.s32.totalorder %s24, 1
    %p47 = por %p45, %p46
    %p49 = scmp.ne.s32.totalorder %s32, %s48
    %p50 = scmp.eq.s32.totalorder %s24, 0
    %p51 = por %p49, %p50
    %s53 = sadd.s32 %s52, 1
    %p56 = scmp.eq.s32.totalorder %s18, 1
    %p57 = scmp.ne.s32.totalorder %s52, %s54
    %p58 = scmp.eq.s32.totalorder %s18, 0
    %p59 = por %p57, %p58
    %p60 = scmp.ne.s32.totalorder %s52, %s54
    %p61 = scmp.eq.s32.totalorder %s23, 1
    %p62 = por %p60, %p61
    %p63 = scmp.ne.s32.totalorder %s54, %s55
    %p64 = scmp.eq.s32.totalorder %s23, 0
    %p65 = por %p63, %p64
    %p66 = scmp.ne.s32.totalorder %s54, %s55
    %p67 = scmp.eq.s32.totalorder %s24, 1
    %p68 = por %p66, %p67
    %p70 = scmp.ne.s32.totalorder %s55, %s69
    %p71 = scmp.eq.s32.totalorder %s24, 0
    %p72 = por %p70, %p71
    %s74 = sadd.s32 %s73, 1
    %p77 = scmp.eq.s32.totalorder %s18, 1
    %p78 = scmp.ne.s32.totalorder %s73, %s75
    %p79 = scmp.eq.s32.totalorder %s18, 0
    %p80 = por %p78, %p79
    %p81 = scmp.ne.s32.totalorder %s73, %s75
    %p82 = scmp.eq.s32.totalorder %s23, 1
    %p83 = por %p81, %p82
    %p84 = scmp.ne.s32.totalorder %s75, %s76
    %p85 = scmp.eq.s32.totalorder %s23, 0
    %p86 = por %p84, %p85
    %p87 = scmp.ne.s32.totalorder %s75, %s76
    %p88 = scmp.eq.s32.totalorder %s24, 1
    %p89 = por %p87, %p88
    %p91 = scmp.ne.s32.totalorder %s76, %s90
    %p92 = scmp.eq.s32.totalorder %s24, 0
    %p93 = por %p91, %p92
    %s95 = sadd.s32 %s94, 1
    %p98 = scmp.eq.s32.totalorder %s18, 1
    %p99 = scmp.ne.s32.totalorder %s94, %s96
    %p100 = scmp.eq.s32.totalorder %s18, 0
    %p101 = por %p99, %p100
    %p102 = scmp.ne.s32.totalorder %s94, %s96
    %p103 = scmp.eq.s32.totalorder %s23, 1
    %p104 = por %p102, %p103
    %p105 = scmp.ne.s32.totalorder %s96, %s97
    %p106 = scmp.eq.s32.totalorder %s23, 0
    %p107 = por %p105, %p106
    %p108 = scmp.ne.s32.totalorder %s96, %s97
    %p109 = scmp.eq.s32.totalorder %s24, 1
    %p110 = por %p108, %p109
    %p112 = scmp.ne.s32.totalorder %s97, %s111
    %p113 = scmp.eq.s32.totalorder %s24, 0
    %p114 = por %p112, %p113
    %s116 = sadd.s32 %s115, 1
    %p119 = scmp.eq.s32.totalorder %s18, 1
    %p120 = scmp.ne.s32.totalorder %s115, %s117
    %p121 = scmp.eq.s32.totalorder %s18, 0
    %p122 = por %p120, %p121
    %p123 = scmp.ne.s32.totalorder %s115, %s117
    %p124 = scmp.eq.s32.totalorder %s23, 1
    %p125 = por %p123, %p124
    %p126 = scmp.ne.s32.totalorder %s117, %s118
    %p127 = scmp.eq.s32.totalorder %s23, 0
    %p128 = por %p126, %p127
    %p129 = scmp.ne.s32.totalorder %s117, %s118
    %p130 = scmp.eq.s32.totalorder %s24, 1
    %p131 = por %p129, %p130
    %p133 = scmp.ne.s32.totalorder %s118, %s132
    %p134 = scmp.eq.s32.totalorder %s24, 0
    %p135 = por %p133, %p134
    %s137 = sadd.s32 %s136, 1
    %p140 = scmp.eq.s32.totalorder %s18, 1
    %p141 = scmp.ne.s32.totalorder %s136, %s138
    %p142 = scmp.eq.s32.totalorder %s18, 0
    %p143 = por %p141, %p142
    %p144 = scmp.ne.s32.totalorder %s136, %s138
    %p145 = scmp.eq.s32.totalorder %s23, 1
    %p146 = por %p144, %p145
    %p147 = scmp.ne.s32.totalorder %s138, %s139
    %p148 = scmp.eq.s32.totalorder %s23, 0
    %p149 = por %p147, %p148
    %p150 = scmp.ne.s32.totalorder %s138, %s139
    %p151 = scmp.eq.s32.totalorder %s24, 1
    %p152 = por %p150, %p151
    %p154 = scmp.ne.s32.totalorder %s139, %s153
    %p155 = scmp.eq.s32.totalorder %s24, 0
    %p156 = por %p154, %p155
    %s158 = sadd.s32 %s157, 1
    %p161 = scmp.eq.s32.totalorder %s18, 1
    %p162 = scmp.ne.s32.totalorder %s157, %s159
    %p163 = scmp.eq.s32.totalorder %s18, 0
    %p164 = por %p162, %p163
    %p165 = scmp.ne.s32.totalorder %s157, %s159
    %p166 = scmp.eq.s32.totalorder %s23, 1
    %p167 = por %p165, %p166
    %p168 = scmp.ne.s32.totalorder %s159, %s160
    %p169 = scmp.eq.s32.totalorder %s23, 0
    %p170 = por %p168, %p169
    %p171 = scmp.ne.s32.totalorder %s159, %s160
    %p172 = scmp.eq.s32.totalorder %s24, 1
    %p173 = por %p171, %p172
    %p175 = scmp.ne.s32.totalorder %s160, %s174
    %p176 = scmp.eq.s32.totalorder %s24, 0
    %p177 = por %p175, %p176
    %s179 = sadd.s32 %s178, 1
    %p182 = scmp.eq.s32.totalorder %s18, 1
    %p183 = scmp.ne.s32.totalorder %s178, %s180
    %p184 = scmp.eq.s32.totalorder %s18, 0
    %p185 = por %p183, %p184
    %p186 = scmp.ne.s32.totalorder %s178, %s180
    %p187 = scmp.eq.s32.totalorder %s23, 1
    %p188 = por %p186, %p187
    %p189 = scmp.ne.s32.totalorder %s180, %s181
    %p190 = scmp.eq.s32.totalorder %s23, 0
    %p191 = por %p189, %p190
    %p192 = scmp.ne.s32.totalorder %s180, %s181
    %p193 = scmp.eq.s32.totalorder %s24, 1
    %p194 = por %p192, %p193
    %p196 = scmp.ne.s32.totalorder %s181, %s195
    %p197 = scmp.eq.s32.totalorder %s24, 0
    %p198 = por %p196, %p197
    %s200 = sadd.s32 %s199, 1
    %p203 = scmp.eq.s32.totalorder %s18, 1
    %p204 = scmp.ne.s32.totalorder %s199, %s201
    %p205 = scmp.eq.s32.totalorder %s18, 0
    %p206 = por %p204, %p205
    %p207 = scmp.ne.s32.totalorder %s199, %s201
    %p208 = scmp.eq.s32.totalorder %s23, 1
    %p209 = por %p207, %p208
    %p210 = scmp.ne.s32.totalorder %s201, %s202
    %p211 = scmp.eq.s32.totalorder %s23, 0
    %p212 = por %p210, %p211
    %p213 = scmp.ne.s32.totalorder %s201, %s202
    %p214 = scmp.eq.s32.totalorder %s24, 1
    %p215 = por %p213, %p214
    %p217 = scmp.ne.s32.totalorder %s202, %s216
    %p218 = scmp.eq.s32.totalorder %s24, 0
    %p219 = por %p217, %p218
    %s221 = sadd.s32 %s220, 1
    %p224 = scmp.eq.s32.totalorder %s18, 1
    %p225 = scmp.ne.s32.totalorder %s220, %s222
    %p226 = scmp.eq.s32.totalorder %s18, 0
    %p227 = por %p225, %p226
    %p228 = scmp.ne.s32.totalorder %s220, %s222
    %p229 = scmp.eq.s32.totalorder %s23, 1
    %p230 = por %p228, %p229
    %p231 = scmp.ne.s32.totalorder %s222, %s223
    %p232 = scmp.eq.s32.totalorder %s23, 0
    %p233 = por %p231, %p232
    %p234 = scmp.ne.s32.totalorder %s222, %s223
    %p235 = scmp.eq.s32.totalorder %s24, 1
    %p236 = por %p234, %p235
    %p238 = scmp.ne.s32.totalorder %s223, %s237
    %p239 = scmp.eq.s32.totalorder %s24, 0
    %p240 = por %p238, %p239
    %s242 = sadd.s32 %s241, 1
    %p245 = scmp.eq.s32.totalorder %s18, 1
    %p246 = scmp.ne.s32.totalorder %s241, %s243
    %p247 = scmp.eq.s32.totalorder %s18, 0
    %p248 = por %p246, %p247
    %p249 = scmp.ne.s32.totalorder %s241, %s243
    %p250 = scmp.eq.s32.totalorder %s23, 1
    %p251 = por %p249, %p250
    %p252 = scmp.ne.s32.totalorder %s243, %s244
    %p253 = scmp.eq.s32.totalorder %s23, 0
    %p254 = por %p252, %p253
    %p255 = scmp.ne.s32.totalorder %s243, %s244
    %p256 = scmp.eq.s32.totalorder %s24, 1
    %p257 = por %p255, %p256
    %p259 = scmp.ne.s32.totalorder %s244, %s258
    %p260 = scmp.eq.s32.totalorder %s24, 0
    %p261 = por %p259, %p260
    %s263 = sadd.s32 %s262, 1
    %p266 = scmp.eq.s32.totalorder %s18, 1
    %p267 = scmp.ne.s32.totalorder %s262, %s264
    %p268 = scmp.eq.s32.totalorder %s18, 0
    %p269 = por %p267, %p268
    %p270 = scmp.ne.s32.totalorder %s262, %s264
    %p271 = scmp.eq.s32.totalorder %s23, 1
    %p272 = por %p270, %p271
    %p273 = scmp.ne.s32.totalorder %s264, %s265
    %p274 = scmp.eq.s32.totalorder %s23, 0
    %p275 = por %p273, %p274
    %p276 = scmp.ne.s32.totalorder %s264, %s265
    %p277 = scmp.eq.s32.totalorder %s24, 1
    %p278 = por %p276, %p277
    %p280 = scmp.ne.s32.totalorder %s265, %s279
    %p281 = scmp.eq.s32.totalorder %s24, 0
    %p282 = por %p280, %p281
    %s283 = ssub.s32 %s18, %s25
    %p284 = scmp.eq.s32.totalorder %s283, 0
    %s286 = sadd.s32 %s285, 1
    %s287 = scalar_select %p284, %s285, %s286
    %p290 = pneg %p284
    %p291 = scmp.eq.s32.totalorder %s18, 1
    %p292 = por %p290, %p291
    %p293 = scmp.ne.s32.totalorder %s285, %s288
    %p294 = scmp.eq.s32.totalorder %s18, 0
    %p295 = por %p293, %p294
    %p296 = scmp.ne.s32.totalorder %s285, %s288
    %p297 = scmp.eq.s32.totalorder %s23, 1
    %p298 = por %p296, %p297
    %p299 = scmp.ne.s32.totalorder %s288, %s289
    %p300 = scmp.eq.s32.totalorder %s23, 0
    %p301 = por %p299, %p300
    %p302 = scmp.ne.s32.totalorder %s288, %s289
    %p303 = scmp.eq.s32.totalorder %s24, 1
    %p304 = por %p302, %p303
    %p306 = scmp.ne.s32.totalorder %s289, %s305
    %p307 = scmp.eq.s32.totalorder %s24, 0
    %p308 = por %p306, %p307
    %p309 = scmp.le.s32.totalorder 1, %s18
    %p310 = scmp.lt.s32.totalorder %s18, 3
    %p311 = pnand %p309, %p310
    %p312 = pneg %p311
    // Predicated region
    $region9: #{rb_forward.1} parent=5 // pred_check
      _
    $region10: #{rb_forward.1} parent=5 // pred_check_branch
      %314 = sbr.rel (%p311) target = $region12
    $region11: #{rb_forward.1} parent=5 // pred_region
      %s315 = ssub.s32 %s18, 1
      // Predicated region
      $region13: #{rb_forward.1} parent=11 // pred_check
        %p316 = pneg %p65
      $region14: #{rb_forward.1} parent=11 // pred_check_branch
        %318 = sbr.rel (%p316) target = $region16
      $region15: #{rb_forward.1} parent=11 // pred_region
        _
      $region16: #{rb_forward.1} parent=11 // pred_fallthru
        _
      // Predicated region
      $region17: #{rb_forward.1} parent=11 // pred_check
        %p319 = pneg %p86
      $region18: #{rb_forward.1} parent=11 // pred_check_branch
        %321 = sbr.rel (%p319) target = $region20
      $region19: #{rb_forward.1} parent=11 // pred_region
        _
      $region20: #{rb_forward.1} parent=11 // pred_fallthru
        _
      // Predicated region
      $region21: #{rb_forward.1} parent=11 // pred_check
        %p322 = pneg %p107
      $region22: #{rb_forward.1} parent=11 // pred_check_branch
        %324 = sbr.rel (%p322) target = $region24
      $region23: #{rb_forward.1} parent=11 // pred_region
        _
      $region24: #{rb_forward.1} parent=11 // pred_fallthru
        _
      // Predicated region
      $region25: #{rb_forward.1} parent=11 // pred_check
        %p325 = pneg %p128
      $region26: #{rb_forward.1} parent=11 // pred_check_branch
        %327 = sbr.rel (%p325) target = $region28
      $region27: #{rb_forward.1} parent=11 // pred_region
        _
      $region28: #{rb_forward.1} parent=11 // pred_fallthru
        _
      // Predicated region
      $region29: #{rb_forward.1} parent=11 // pred_check
        %p328 = pneg %p149
      $region30: #{rb_forward.1} parent=11 // pred_check_branch
        %330 = sbr.rel (%p328) target = $region32
      $region31: #{rb_forward.1} parent=11 // pred_region
        _
      $region32: #{rb_forward.1} parent=11 // pred_fallthru
        _
      // Predicated region
      $region33: #{rb_forward.1} parent=11 // pred_check
        %p331 = pneg %p170
      $region34: #{rb_forward.1} parent=11 // pred_check_branch
        %333 = sbr.rel (%p331) target = $region36
      $region35: #{rb_forward.1} parent=11 // pred_region
        _
      $region36: #{rb_forward.1} parent=11 // pred_fallthru
        _
      // Predicated region
      $region37: #{rb_forward.1} parent=11 // pred_check
        %p334 = pneg %p191
      $region38: #{rb_forward.1} parent=11 // pred_check_branch
        %336 = sbr.rel (%p334) target = $region40
      $region39: #{rb_forward.1} parent=11 // pred_region
        _
      $region40: #{rb_forward.1} parent=11 // pred_fallthru
        _
      // Predicated region
      $region41: #{rb_forward.1} parent=11 // pred_check
        %p337 = pneg %p212
      $region42: #{rb_forward.1} parent=11 // pred_check_branch
        %339 = sbr.rel (%p337) target = $region44
      $region43: #{rb_forward.1} parent=11 // pred_region
        _
      $region44: #{rb_forward.1} parent=11 // pred_fallthru
        _
      // Predicated region
      $region45: #{rb_forward.1} parent=11 // pred_check
        %p340 = pneg %p233
      $region46: #{rb_forward.1} parent=11 // pred_check_branch
        %342 = sbr.rel (%p340) target = $region48
      $region47: #{rb_forward.1} parent=11 // pred_region
        _
      $region48: #{rb_forward.1} parent=11 // pred_fallthru
        _
      // Predicated region
      $region49: #{rb_forward.1} parent=11 // pred_check
        %p343 = pneg %p254
      $region50: #{rb_forward.1} parent=11 // pred_check_branch
        %345 = sbr.rel (%p343) target = $region52
      $region51: #{rb_forward.1} parent=11 // pred_region
        _
      $region52: #{rb_forward.1} parent=11 // pred_fallthru
        _
      // Predicated region
      $region53: #{rb_forward.1} parent=11 // pred_check
        %p346 = pneg %p275
      $region54: #{rb_forward.1} parent=11 // pred_check_branch
        %348 = sbr.rel (%p346) target = $region56
      $region55: #{rb_forward.1} parent=11 // pred_region
        _
      $region56: #{rb_forward.1} parent=11 // pred_fallthru
        _
    $region12: #{rb_forward.1} parent=5 // pred_fallthru
      _
    %p349 = scmp.lt.s32.totalorder %s18, 2
    // Predicated region
    $region57: #{rb_forward.1} parent=5 // pred_check
      %p350 = pneg %p349
    $region58: #{rb_forward.1} parent=5 // pred_check_branch
      %352 = sbr.rel (%p350) target = $region60
    $region59: #{rb_forward.1} parent=5 // pred_region
      // Predicated region
      $region61: #{rb_forward.1} parent=59 // pred_check
        %p353 = pneg %p38
      $region62: #{rb_forward.1} parent=59 // pred_check_branch
        %355 = sbr.rel (%p353) target = $region64
      $region63: #{rb_forward.1} parent=59 // pred_region
        %p356 = scmp.lt.s32.totalorder %s18, 1
        %s357 = scalar_select %p356, %s18, 1
        %s358 = smul.addr %s357, 3
        %s359 = smul.addr %s358, 4
        %s360 = scalar_lea.vmem %s0, %s359
      $region64: #{rb_forward.1} parent=59 // pred_fallthru
        _
    $region60: #{rb_forward.1} parent=5 // pred_fallthru
      _
    %p361 = scmp.le.s32.totalorder 1, %s18
    %p362 = scmp.lt.s32.totalorder %s18, 3
    %p363 = pnand %p361, %p362
    %p364 = pneg %p363
    // Predicated region
    $region65: #{rb_forward.1} parent=5 // pred_check
      _
    $region66: #{rb_forward.1} parent=5 // pred_check_branch
      %366 = sbr.rel (%p363) target = $region68
    $region67: #{rb_forward.1} parent=5 // pred_region
      %s367 = ssub.s32 %s18, 1
      %p368 = scmp.lt.s32.totalorder %s23, 1
      %s369 = scalar_select %p368, %s23, 1
      %s370 = smul.addr %s369, 3
      %s371 = smul.addr %s370, 4
      %s372 = scalar_lea.vmem %s0, %s371
      %p373 = pneg %p44
      %p374 = pneg %p41
      %p375 = pneg %p65
      %p376 = pneg %p62
      %p377 = pneg %p86
      %p378 = pneg %p83
      %p379 = pneg %p107
      %p380 = pneg %p104
      %p381 = pneg %p128
      %p382 = pneg %p125
      %p383 = pneg %p149
      %p384 = pneg %p146
      %p385 = pneg %p170
      %p386 = pneg %p167
      %p387 = pneg %p191
      %p388 = pneg %p188
      %p389 = pneg %p212
      %p390 = pneg %p209
      %p391 = pneg %p233
      %p392 = pneg %p230
      %p393 = pneg %p254
      %p394 = pneg %p251
      %p395 = pneg %p275
      %p396 = pneg %p272
      %p397 = pneg %p301
      %p398 = pneg %p298
      %p399 = scmp.lt.s32.totalorder %s23, 1
      %s400 = scalar_select %p399, %s23, 1
      %s401 = smul.addr %s400, 3
      %s402 = smul.addr %s401, 4
      %s403 = scalar_lea.vmem %s12, %s402
      %p404 = scmp.lt.s32.totalorder %s23, 1
      %s405 = scalar_select %p404, %s23, 1
      %s406 = smul.addr %s405, 3
      %s407 = smul.addr %s406, 4
      %s408 = scalar_lea.vmem %s0, %s407
      %p409 = scmp.lt.s32.totalorder %s23, 1
      %s410 = scalar_select %p409, %s23, 1
      %s411 = smul.addr %s410, 3
      %s412 = smul.addr %s411, 4
      %s413 = scalar_lea.vmem %s12, %s412
      %v414 = vld [vmem:[%s1] sm:$0x7]
      %v415 = vld [vmem:[%s408] sm:$0xff]
      %v416 = vld [vmem:[%s408 + $0x8] sm:$0xf]
      %v417 = vld [vmem:[%s2] sm:$0xf]
      %v418 = vld [vmem:[%s3] sm:$0xf]
      %v421 = vcombine.high %v415, %v415
      %422 = vrot.lane.b32.xlu0 %v415, 19
      %v423 = vpop.permute.xlu0 %422
      %424 = vrot.lane.b32.xlu0 %v421, 19
      %v425 = vpop.permute.xlu0 %424
      %426 = vrot.lane.b32.xlu0 %v416, 19
      %v427 = vpop.permute.xlu0 %426
      %vm428 = vcmask 154624
      %v429 = vsel %vm428, %v423, %v425
      %v430 = vsel %vm428, %v425, %v427
      %v434 = vsel %vm428, 0.0, %v423
      %vm435 = vcmask 711680
      %v436 = vsel %vm435, %v430, 0.0
      %v439 = vrot.slane %v434, 4
      %v440 = vrot.slane %v429, 4
      %v441 = vrot.slane %v436, 4
      %442 = vrot.lane.b32.xlu0 %v439, 127
      %v443 = vpop.permute.xlu0 %442
      %444 = vrot.lane.b32.xlu0 %v440, 127
      %v445 = vpop.permute.xlu0 %444
      %446 = vrot.lane.b32.xlu0 %v441, 127
      %v447 = vpop.permute.xlu0 %446
      %vm448 = vcmask 1039360
      %v449 = vsel %vm448, %v443, %v445
      %v450 = vsel %vm448, %v445, %v447
      %454 = vrot.lane.b32.xlu0 %v434, 126
      %v455 = vpop.permute.xlu0 %454
      %456 = vrot.lane.b32.xlu0 %v429, 126
      %v457 = vpop.permute.xlu0 %456
      %458 = vrot.lane.b32.xlu0 %v436, 126
      %v459 = vpop.permute.xlu0 %458
      %vm460 = vcmask 1031168
      %v461 = vsel %vm460, %v455, %v457
      %v462 = vsel %vm460, %v457, %v459
      %466 = vrot.lane.b32.xlu0 %v439, 110
      %v467 = vpop.permute.xlu0 %466
      %468 = vrot.lane.b32.xlu0 %v440, 110
      %v469 = vpop.permute.xlu0 %468
      %470 = vrot.lane.b32.xlu0 %v441, 110
      %v471 = vpop.permute.xlu0 %470
      %vm472 = vcmask 900096
      %v473 = vsel %vm472, %v467, %v469
      %v474 = vsel %vm472, %v469, %v471
      %478 = vrot.lane.b32.xlu0 %v434, 109
      %v479 = vpop.permute.xlu0 %478
      %480 = vrot.lane.b32.xlu0 %v429, 109
      %v481 = vpop.permute.xlu0 %480
      %482 = vrot.lane.b32.xlu0 %v436, 109
      %v483 = vpop.permute.xlu0 %482
      %vm484 = vcmask 891904
      %v485 = vsel %vm484, %v479, %v481
      %v486 = vsel %vm484, %v481, %v483
      %490 = vrot.lane.b32.xlu0 %v439, 108
      %v491 = vpop.permute.xlu0 %490
      %492 = vrot.lane.b32.xlu0 %v440, 108
      %v493 = vpop.permute.xlu0 %492
      %494 = vrot.lane.b32.xlu0 %v441, 108
      %v495 = vpop.permute.xlu0 %494
      %vm496 = vcmask 883712
      %v497 = vsel %vm496, %v491, %v493
      %v498 = vsel %vm496, %v493, %v495
      %502 = vrot.lane.b32.xlu0 %v434, 92
      %v503 = vpop.permute.xlu0 %502
      %504 = vrot.lane.b32.xlu0 %v429, 92
      %v505 = vpop.permute.xlu0 %504
      %506 = vrot.lane.b32.xlu0 %v436, 92
      %v507 = vpop.permute.xlu0 %506
      %vm508 = vcmask 752640
      %v509 = vsel %vm508, %v503, %v505
      %v510 = vsel %vm508, %v505, %v507
      %514 = vrot.lane.b32.xlu0 %v439, 91
      %v515 = vpop.permute.xlu0 %514
      %516 = vrot.lane.b32.xlu0 %v440, 91
      %v517 = vpop.permute.xlu0 %516
      %518 = vrot.lane.b32.xlu0 %v441, 91
      %v519 = vpop.permute.xlu0 %518
      %vm520 = vcmask 744448
      %v521 = vsel %vm520, %v515, %v517
      %v522 = vsel %vm520, %v517, %v519
      %526 = vrot.lane.b32.xlu0 %v434, 90
      %v527 = vpop.permute.xlu0 %526
      %528 = vrot.lane.b32.xlu0 %v429, 90
      %v529 = vpop.permute.xlu0 %528
      %530 = vrot.lane.b32.xlu0 %v436, 90
      %v531 = vpop.permute.xlu0 %530
      %vm532 = vcmask 736256
      %v533 = vsel %vm532, %v527, %v529
      %v534 = vsel %vm532, %v529, %v531
      %vm535 = vcmask 1043456
      %v536 = vsel %vm535, %v434, %v449
      %v537 = vsel %vm535, %v429, %v450
      %v538 = vsel %vm535, %v436, %v447
      %v539 = vsel %vm535, %v461, %v473
      %v540 = vsel %vm535, %v462, %v474
      %v541 = vsel %vm535, %v459, %v471
      %v542 = vsel %vm535, %v485, %v497
      %v543 = vsel %vm535, %v486, %v498
      %v544 = vsel %vm535, %v483, %v495
      %v545 = vsel %vm535, %v509, %v521
      %v546 = vsel %vm535, %v510, %v522
      %v547 = vsel %vm535, %v507, %v519
      %549 = vset.pattern.permute.xlu0 0
      %550 = vperm.xlu0 %549, %v418
      %v551 = vpop.permute.xlu0 %550
      %vm553 = vcmask 293888
      %v555 = vsel %vm553, %v417, 0
      %v557 = vsel %vm535, %v533, 0
      %v559 = vsel %vm535, %v534, 0
      %v561 = vsel %vm535, %v531, 0
      %563 = vmatprep.subr.mxu0 0.0
      %564 = vmatpush1.msra.mxu0 0.0
      %565 = vmatprep.subr.mxu0 0.0
      %566 = vmatpush1.msra.mxu0 0.0
      %567 = vmatprep.subr.mxu0 0.0
      %568 = vmatpush1.msra.mxu0 0.0
      %569 = vmatprep.subr.mxu0 0.0
      %570 = vmatpush1.msra.mxu0 0.0
      %571 = vmatprep.subr.mxu0 0.0
      %572 = vmatpush1.msra.mxu0 0.0
      %573 = vmatprep.subr.mxu0 0.0
      %574 = vmatpush1.msra.mxu0 0.0
      %575 = vmatprep.subr.mxu0 0.0
      %576 = vmatpush1.msra.mxu0 0.0
      %577 = vmatprep.subr.mxu0 0.0
      %578 = vmatpush1.msra.mxu0 0.0
      %579 = vmatprep.subr.mxu0 0.0
      %580 = vmatpush1.msra.mxu0 0.0
      %581 = vmatprep.subr.mxu0 0.0
      %582 = vmatpush1.msra.mxu0 0.0
      %583 = vmatprep.subr.mxu0 0.0
      %584 = vmatpush1.msra.mxu0 0.0
      %585 = vmatprep.subr.mxu0 %v559
      %586 = vmatpush1.msra.mxu0 %v557
      %587 = vmatprep.subr.mxu0 %v546
      %588 = vmatpush1.msra.mxu0 %v545
      %589 = vmatprep.subr.mxu0 %v543
      %590 = vmatpush1.msra.mxu0 %v542
      %591 = vmatprep.subr.mxu0 %v540
      %592 = vmatpush1.msra.mxu0 %v539
      %593 = vmatprep.subr.mxu0 %v537
      %594 = vmatpush1.msra.mxu0 %v536
      %595 = vmatprep.subr.mxu0 0.0
      %596 = vmatpush2.msra.mxu0 0.0
      %597 = vmatprep.subr.mxu0 0.0
      %598 = vmatpush2.msra.mxu0 0.0
      %599 = vmatprep.subr.mxu0 0.0
      %600 = vmatpush2.msra.mxu0 0.0
      %601 = vmatprep.subr.mxu0 0.0
      %602 = vmatpush2.msra.mxu0 0.0
      %603 = vmatprep.subr.mxu0 0.0
      %604 = vmatpush2.msra.mxu0 0.0
      %605 = vmatprep.subr.mxu0 0.0
      %606 = vmatpush2.msra.mxu0 0.0
      %607 = vmatprep.subr.mxu0 0.0
      %608 = vmatpush2.msra.mxu0 0.0
      %609 = vmatprep.subr.mxu0 0.0
      %610 = vmatpush2.msra.mxu0 0.0
      %611 = vmatprep.subr.mxu0 0.0
      %612 = vmatpush2.msra.mxu0 0.0
      %613 = vmatprep.subr.mxu0 0.0
      %614 = vmatpush2.msra.mxu0 0.0
      %615 = vmatprep.subr.mxu0 0.0
      %616 = vmatpush2.msra.mxu0 0.0
      %617 = vmatprep.subr.mxu0 0.0
      %618 = vmatpush2.msra.mxu0 0.0
      %619 = vmatprep.subr.mxu0 0.0
      %620 = vmatpush2.msra.mxu0 0.0
      %621 = vmatprep.subr.mxu0 0.0
      %622 = vmatpush2.msra.mxu0 0.0
      %623 = vmatprep.subr.mxu0 0.0
      %624 = vmatpush2.msra.mxu0 0.0
      %625 = vmatprep.subr.mxu0 0.0
      %626 = vmatpush2.msra.mxu0 0.0
      %627 = vmatprep.mubr.f32.mxu0 0.0
      %628 = vmatmul.mubr.f32.gmra.mxu0 %v555
      %v629 = vpop.f32.mrf.mxu0
      %v630 = vadd.f32 %v551, %v629
      %v631 = vpop.f32.mrf.mxu0
      %v632 = vadd.f32 %v551, %v631
      %633 = vdwg.mxu0
      %634 = vmatprep.subr.mxu0 0.0
      %635 = vmatpush1.msra.mxu0 0.0
      %636 = vmatprep.subr.mxu0 0.0
      %637 = vmatpush1.msra.mxu0 0.0
      %638 = vmatprep.subr.mxu0 0.0
      %639 = vmatpush1.msra.mxu0 0.0
      %640 = vmatprep.subr.mxu0 0.0
      %641 = vmatpush1.msra.mxu0 0.0
      %642 = vmatprep.subr.mxu0 0.0
      %643 = vmatpush1.msra.mxu0 0.0
      %644 = vmatprep.subr.mxu0 0.0
      %645 = vmatpush1.msra.mxu0 0.0
      %646 = vmatprep.subr.mxu0 0.0
      %647 = vmatpush1.msra.mxu0 0.0
      %648 = vmatprep.subr.mxu0 0.0
      %649 = vmatpush1.msra.mxu0 0.0
      %650 = vmatprep.subr.mxu0 0.0
      %651 = vmatpush1.msra.mxu0 0.0
      %652 = vmatprep.subr.mxu0 0.0
      %653 = vmatpush1.msra.mxu0 0.0
      %654 = vmatprep.subr.mxu0 0.0
      %655 = vmatpush1.msra.mxu0 0.0
      %656 = vmatprep.subr.mxu0 0.0
      %657 = vmatpush1.msra.mxu0 %v561
      %658 = vmatprep.subr.mxu0 0.0
      %659 = vmatpush1.msra.mxu0 %v547
      %660 = vmatprep.subr.mxu0 0.0
      %661 = vmatpush1.msra.mxu0 %v544
      %662 = vmatprep.subr.mxu0 0.0
      %663 = vmatpush1.msra.mxu0 %v541
      %664 = vmatprep.subr.mxu0 0.0
      %665 = vmatpush1.msra.mxu0 %v538
      %666 = vmatprep.subr.mxu0 0.0
      %667 = vmatpush2.msra.mxu0 0.0
      %668 = vmatprep.subr.mxu0 0.0
      %669 = vmatpush2.msra.mxu0 0.0
      %670 = vmatprep.subr.mxu0 0.0
      %671 = vmatpush2.msra.mxu0 0.0
      %672 = vmatprep.subr.mxu0 0.0
      %673 = vmatpush2.msra.mxu0 0.0
      %674 = vmatprep.subr.mxu0 0.0
      %675 = vmatpush2.msra.mxu0 0.0
      %676 = vmatprep.subr.mxu0 0.0
      %677 = vmatpush2.msra.mxu0 0.0
      %678 = vmatprep.subr.mxu0 0.0
      %679 = vmatpush2.msra.mxu0 0.0
      %680 = vmatprep.subr.mxu0 0.0
      %681 = vmatpush2.msra.mxu0 0.0
      %682 = vmatprep.subr.mxu0 0.0
      %683 = vmatpush2.msra.mxu0 0.0
      %684 = vmatprep.subr.mxu0 0.0
      %685 = vmatpush2.msra.mxu0 0.0
      %686 = vmatprep.subr.mxu0 0.0
      %687 = vmatpush2.msra.mxu0 0.0
      %688 = vmatprep.subr.mxu0 0.0
      %689 = vmatpush2.msra.mxu0 0.0
      %690 = vmatprep.subr.mxu0 0.0
      %691 = vmatpush2.msra.mxu0 0.0
      %692 = vmatprep.subr.mxu0 0.0
      %693 = vmatpush2.msra.mxu0 0.0
      %694 = vmatprep.subr.mxu0 0.0
      %695 = vmatpush2.msra.mxu0 0.0
      %696 = vmatprep.subr.mxu0 0.0
      %697 = vmatpush2.msra.mxu0 0.0
      %698 = vmatprep.mubr.f32.mxu0 0.0
      %699 = vmatmul.mubr.f32.gmra.mxu0 %v555
      %v700 = vpop.f32.mrf.mxu0
      %v701 = vadd.f32 %v551, %v700
      %v702 = vpop.f32.mrf.mxu0
      %703 = vdwg.mxu0
      %v704 = vmax.f32 %v630, 0.0
      %v705 = vmax.f32 %v632, 0.0
      %v706 = vmax.f32 %v701, 0.0
      %v708 = vlaneseq
      %v709 = vshrl.u32 %v708, 7
      %v710 = vsub.s32 0, %v709
      %v711 = vrot.slane %v414, %v710
      %v712 = vlaneseq
      %v713 = vshrl.u32 %v712, 7
      %v714 = vsub.s32 1, %v713
      %v715 = vrot.slane %v414, %v714
      %v716 = vlaneseq
      %v717 = vshrl.u32 %v716, 7
      %v718 = vsub.s32 2, %v717
      %v719 = vrot.slane %v414, %v718
      %v723 = vmul.f32 %v711, %v704
      %v724 = vmul.f32 %v715, %v705
      %v725 = vmul.f32 %v719, %v706
      %v726 = vld [vmem:[%s4] sm:$0xf]
      %v727 = vld [vmem:[%s5] sm:$0xf]
      %731 = vrot.lane.b32.xlu0 %v723, 19
      %v732 = vpop.permute.xlu0 %731
      %733 = vrot.lane.b32.xlu0 %v724, 19
      %v734 = vpop.permute.xlu0 %733
      %735 = vrot.lane.b32.xlu0 %v725, 19
      %v736 = vpop.permute.xlu0 %735
      %v737 = vsel %vm428, %v732, %v734
      %v738 = vsel %vm428, %v734, %v736
      %v742 = vsel %vm428, 0.0, %v732
      %v743 = vsel %vm435, %v738, 0.0
      %v746 = vrot.slane %v742, 4
      %v747 = vrot.slane %v737, 4
      %v748 = vrot.slane %v743, 4
      %749 = vrot.lane.b32.xlu0 %v746, 127
      %v750 = vpop.permute.xlu0 %749
      %751 = vrot.lane.b32.xlu0 %v747, 127
      %v752 = vpop.permute.xlu0 %751
      %753 = vrot.lane.b32.xlu0 %v748, 127
      %v754 = vpop.permute.xlu0 %753
      %v755 = vsel %vm448, %v750, %v752
      %v756 = vsel %vm448, %v752, %v754
      %760 = vrot.lane.b32.xlu0 %v742, 126
      %v761 = vpop.permute.xlu0 %760
      %762 = vrot.lane.b32.xlu0 %v737, 126
      %v763 = vpop.permute.xlu0 %762
      %764 = vrot.lane.b32.xlu0 %v743, 126
      %v765 = vpop.permute.xlu0 %764
      %v766 = vsel %vm460, %v761, %v763
      %v767 = vsel %vm460, %v763, %v765
      %771 = vrot.lane.b32.xlu0 %v746, 110
      %v772 = vpop.permute.xlu0 %771
      %773 = vrot.lane.b32.xlu0 %v747, 110
      %v774 = vpop.permute.xlu0 %773
      %775 = vrot.lane.b32.xlu0 %v748, 110
      %v776 = vpop.permute.xlu0 %775
      %v777 = vsel %vm472, %v772, %v774
      %v778 = vsel %vm472, %v774, %v776
      %782 = vrot.lane.b32.xlu0 %v742, 109
      %v783 = vpop.permute.xlu0 %782
      %784 = vrot.lane.b32.xlu0 %v737, 109
      %v785 = vpop.permute.xlu0 %784
      %786 = vrot.lane.b32.xlu0 %v743, 109
      %v787 = vpop.permute.xlu0 %786
      %v788 = vsel %vm484, %v783, %v785
      %v789 = vsel %vm484, %v785, %v787
      %793 = vrot.lane.b32.xlu0 %v746, 108
      %v794 = vpop.permute.xlu0 %793
      %795 = vrot.lane.b32.xlu0 %v747, 108
      %v796 = vpop.permute.xlu0 %795
      %797 = vrot.lane.b32.xlu0 %v748, 108
      %v798 = vpop.permute.xlu0 %797
      %v799 = vsel %vm496, %v794, %v796
      %v800 = vsel %vm496, %v796, %v798
      %804 = vrot.lane.b32.xlu0 %v742, 92
      %v805 = vpop.permute.xlu0 %804
      %806 = vrot.lane.b32.xlu0 %v737, 92
      %v807 = vpop.permute.xlu0 %806
      %808 = vrot.lane.b32.xlu0 %v743, 92
      %v809 = vpop.permute.xlu0 %808
      %v810 = vsel %vm508, %v805, %v807
      %v811 = vsel %vm508, %v807, %v809
      %815 = vrot.lane.b32.xlu0 %v746, 91
      %v816 = vpop.permute.xlu0 %815
      %817 = vrot.lane.b32.xlu0 %v747, 91
      %v818 = vpop.permute.xlu0 %817
      %819 = vrot.lane.b32.xlu0 %v748, 91
      %v820 = vpop.permute.xlu0 %819
      %v821 = vsel %vm520, %v816, %v818
      %v822 = vsel %vm520, %v818, %v820
      %826 = vrot.lane.b32.xlu0 %v742, 90
      %v827 = vpop.permute.xlu0 %826
      %828 = vrot.lane.b32.xlu0 %v737, 90
      %v829 = vpop.permute.xlu0 %828
      %830 = vrot.lane.b32.xlu0 %v743, 90
      %v831 = vpop.permute.xlu0 %830
      %v832 = vsel %vm532, %v827, %v829
      %v833 = vsel %vm532, %v829, %v831
      %v834 = vsel %vm535, %v742, %v755
      %v835 = vsel %vm535, %v737, %v756
      %v836 = vsel %vm535, %v743, %v754
      %v837 = vsel %vm535, %v766, %v777
      %v838 = vsel %vm535, %v767, %v778
      %v839 = vsel %vm535, %v765, %v776
      %v840 = vsel %vm535, %v788, %v799
      %v841 = vsel %vm535, %v789, %v800
      %v842 = vsel %vm535, %v787, %v798
      %v843 = vsel %vm535, %v810, %v821
      %v844 = vsel %vm535, %v811, %v822
      %v845 = vsel %vm535, %v809, %v820
      %847 = vset.pattern.permute.xlu0 0
      %848 = vperm.xlu0 %847, %v727
      %v849 = vpop.permute.xlu0 %848
      %v852 = vsel %vm553, %v726, 0
      %v854 = vsel %vm535, %v832, 0
      %v856 = vsel %vm535, %v833, 0
      %v858 = vsel %vm535, %v831, 0
      %860 = vmatprep.subr.mxu0 0.0
      %861 = vmatpush1.msra.mxu0 0.0
      %862 = vmatprep.subr.mxu0 0.0
      %863 = vmatpush1.msra.mxu0 0.0
      %864 = vmatprep.subr.mxu0 0.0
      %865 = vmatpush1.msra.mxu0 0.0
      %866 = vmatprep.subr.mxu0 0.0
      %867 = vmatpush1.msra.mxu0 0.0
      %868 = vmatprep.subr.mxu0 0.0
      %869 = vmatpush1.msra.mxu0 0.0
      %870 = vmatprep.subr.mxu0 0.0
      %871 = vmatpush1.msra.mxu0 0.0
      %872 = vmatprep.subr.mxu0 0.0
      %873 = vmatpush1.msra.mxu0 0.0
      %874 = vmatprep.subr.mxu0 0.0
      %875 = vmatpush1.msra.mxu0 0.0
      %876 = vmatprep.subr.mxu0 0.0
      %877 = vmatpush1.msra.mxu0 0.0
      %878 = vmatprep.subr.mxu0 0.0
      %879 = vmatpush1.msra.mxu0 0.0
      %880 = vmatprep.subr.mxu0 0.0
      %881 = vmatpush1.msra.mxu0 0.0
      %882 = vmatprep.subr.mxu0 %v856
      %883 = vmatpush1.msra.mxu0 %v854
      %884 = vmatprep.subr.mxu0 %v844
      %885 = vmatpush1.msra.mxu0 %v843
      %886 = vmatprep.subr.mxu0 %v841
      %887 = vmatpush1.msra.mxu0 %v840
      %888 = vmatprep.subr.mxu0 %v838
      %889 = vmatpush1.msra.mxu0 %v837
      %890 = vmatprep.subr.mxu0 %v835
      %891 = vmatpush1.msra.mxu0 %v834
      %892 = vmatprep.subr.mxu0 0.0
      %893 = vmatpush2.msra.mxu0 0.0
      %894 = vmatprep.subr.mxu0 0.0
      %895 = vmatpush2.msra.mxu0 0.0
      %896 = vmatprep.subr.mxu0 0.0
      %897 = vmatpush2.msra.mxu0 0.0
      %898 = vmatprep.subr.mxu0 0.0
      %899 = vmatpush2.msra.mxu0 0.0
      %900 = vmatprep.subr.mxu0 0.0
      %901 = vmatpush2.msra.mxu0 0.0
      %902 = vmatprep.subr.mxu0 0.0
      %903 = vmatpush2.msra.mxu0 0.0
      %904 = vmatprep.subr.mxu0 0.0
      %905 = vmatpush2.msra.mxu0 0.0
      %906 = vmatprep.subr.mxu0 0.0
      %907 = vmatpush2.msra.mxu0 0.0
      %908 = vmatprep.subr.mxu0 0.0
      %909 = vmatpush2.msra.mxu0 0.0
      %910 = vmatprep.subr.mxu0 0.0
      %911 = vmatpush2.msra.mxu0 0.0
      %912 = vmatprep.subr.mxu0 0.0
      %913 = vmatpush2.msra.mxu0 0.0
      %914 = vmatprep.subr.mxu0 0.0
      %915 = vmatpush2.msra.mxu0 0.0
      %916 = vmatprep.subr.mxu0 0.0
      %917 = vmatpush2.msra.mxu0 0.0
      %918 = vmatprep.subr.mxu0 0.0
      %919 = vmatpush2.msra.mxu0 0.0
      %920 = vmatprep.subr.mxu0 0.0
      %921 = vmatpush2.msra.mxu0 0.0
      %922 = vmatprep.subr.mxu0 0.0
      %923 = vmatpush2.msra.mxu0 0.0
      %924 = vmatprep.mubr.f32.mxu0 0.0
      %925 = vmatmul.mubr.f32.gmra.mxu0 %v852
      %v926 = vpop.f32.mrf.mxu0
      %v927 = vadd.f32 %v849, %v926
      %v928 = vpop.f32.mrf.mxu0
      %v929 = vadd.f32 %v849, %v928
      %930 = vdwg.mxu0
      %931 = vmatprep.subr.mxu0 0.0
      %932 = vmatpush1.msra.mxu0 0.0
      %933 = vmatprep.subr.mxu0 0.0
      %934 = vmatpush1.msra.mxu0 0.0
      %935 = vmatprep.subr.mxu0 0.0
      %936 = vmatpush1.msra.mxu0 0.0
      %937 = vmatprep.subr.mxu0 0.0
      %938 = vmatpush1.msra.mxu0 0.0
      %939 = vmatprep.subr.mxu0 0.0
      %940 = vmatpush1.msra.mxu0 0.0
      %941 = vmatprep.subr.mxu0 0.0
      %942 = vmatpush1.msra.mxu0 0.0
      %943 = vmatprep.subr.mxu0 0.0
      %944 = vmatpush1.msra.mxu0 0.0
      %945 = vmatprep.subr.mxu0 0.0
      %946 = vmatpush1.msra.mxu0 0.0
      %947 = vmatprep.subr.mxu0 0.0
      %948 = vmatpush1.msra.mxu0 0.0
      %949 = vmatprep.subr.mxu0 0.0
      %950 = vmatpush1.msra.mxu0 0.0
      %951 = vmatprep.subr.mxu0 0.0
      %952 = vmatpush1.msra.mxu0 0.0
      %953 = vmatprep.subr.mxu0 0.0
      %954 = vmatpush1.msra.mxu0 %v858
      %955 = vmatprep.subr.mxu0 0.0
      %956 = vmatpush1.msra.mxu0 %v845
      %957 = vmatprep.subr.mxu0 0.0
      %958 = vmatpush1.msra.mxu0 %v842
      %959 = vmatprep.subr.mxu0 0.0
      %960 = vmatpush1.msra.mxu0 %v839
      %961 = vmatprep.subr.mxu0 0.0
      %962 = vmatpush1.msra.mxu0 %v836
      %963 = vmatprep.subr.mxu0 0.0
      %964 = vmatpush2.msra.mxu0 0.0
      %965 = vmatprep.subr.mxu0 0.0
      %966 = vmatpush2.msra.mxu0 0.0
      %967 = vmatprep.subr.mxu0 0.0
      %968 = vmatpush2.msra.mxu0 0.0
      %969 = vmatprep.subr.mxu0 0.0
      %970 = vmatpush2.msra.mxu0 0.0
      %971 = vmatprep.subr.mxu0 0.0
      %972 = vmatpush2.msra.mxu0 0.0
      %973 = vmatprep.subr.mxu0 0.0
      %974 = vmatpush2.msra.mxu0 0.0
      %975 = vmatprep.subr.mxu0 0.0
      %976 = vmatpush2.msra.mxu0 0.0
      %977 = vmatprep.subr.mxu0 0.0
      %978 = vmatpush2.msra.mxu0 0.0
      %979 = vmatprep.subr.mxu0 0.0
      %980 = vmatpush2.msra.mxu0 0.0
      %981 = vmatprep.subr.mxu0 0.0
      %982 = vmatpush2.msra.mxu0 0.0
      %983 = vmatprep.subr.mxu0 0.0
      %984 = vmatpush2.msra.mxu0 0.0
      %985 = vmatprep.subr.mxu0 0.0
      %986 = vmatpush2.msra.mxu0 0.0
      %987 = vmatprep.subr.mxu0 0.0
      %988 = vmatpush2.msra.mxu0 0.0
      %989 = vmatprep.subr.mxu0 0.0
      %990 = vmatpush2.msra.mxu0 0.0
      %991 = vmatprep.subr.mxu0 0.0
      %992 = vmatpush2.msra.mxu0 0.0
      %993 = vmatprep.subr.mxu0 0.0
      %994 = vmatpush2.msra.mxu0 0.0
      %995 = vmatprep.mubr.f32.mxu0 0.0
      %996 = vmatmul.mubr.f32.gmra.mxu0 %v852
      %v997 = vpop.f32.mrf.mxu0
      %v998 = vadd.f32 %v849, %v997
      %v999 = vpop.f32.mrf.mxu0
      %1000 = vdwg.mxu0
      %v1001 = vmul.f32 %v711, %v927
      %v1002 = vmul.f32 %v715, %v929
      %v1003 = vmul.f32 %v719, %v998
      %v1008 = vrot.slane %v1001, 4
      %v1009 = vrot.slane %v1002, 4
      %v1010 = vrot.slane %v1003, 4
      %v1014 = vsel %vm535, %v415, %v1008
      %v1015 = vsel %vm535, %v421, %v1009
      %v1016 = vsel %vm535, %v416, %v1010
      %v1017 = vld [vmem:[%s6] sm:$0xf]
      %v1018 = vld [vmem:[%s7] sm:$0xf]
      %1022 = vrot.lane.b32.xlu0 %v1014, 19
      %v1023 = vpop.permute.xlu0 %1022
      %1024 = vrot.lane.b32.xlu0 %v1015, 19
      %v1025 = vpop.permute.xlu0 %1024
      %1026 = vrot.lane.b32.xlu0 %v1016, 19
      %v1027 = vpop.permute.xlu0 %1026
      %v1028 = vsel %vm428, %v1023, %v1025
      %v1029 = vsel %vm428, %v1025, %v1027
      %v1033 = vsel %vm428, 0.0, %v1023
      %v1034 = vsel %vm435, %v1029, 0.0
      %1037 = vrot.lane.b32.xlu0 %v1033, 127
      %v1038 = vpop.permute.xlu0 %1037
      %1039 = vrot.lane.b32.xlu0 %v1028, 127
      %v1040 = vpop.permute.xlu0 %1039
      %1041 = vrot.lane.b32.xlu0 %v1034, 127
      %v1042 = vpop.permute.xlu0 %1041
      %v1043 = vsel %vm448, %v1038, %v1040
      %v1044 = vsel %vm448, %v1040, %v1042
      %1048 = vrot.lane.b32.xlu0 %v1033, 126
      %v1049 = vpop.permute.xlu0 %1048
      %1050 = vrot.lane.b32.xlu0 %v1028, 126
      %v1051 = vpop.permute.xlu0 %1050
      %1052 = vrot.lane.b32.xlu0 %v1034, 126
      %v1053 = vpop.permute.xlu0 %1052
      %v1054 = vsel %vm460, %v1049, %v1051
      %v1055 = vsel %vm460, %v1051, %v1053
      %1059 = vrot.lane.b32.xlu0 %v1033, 110
      %v1060 = vpop.permute.xlu0 %1059
      %1061 = vrot.lane.b32.xlu0 %v1028, 110
      %v1062 = vpop.permute.xlu0 %1061
      %1063 = vrot.lane.b32.xlu0 %v1034, 110
      %v1064 = vpop.permute.xlu0 %1063
      %v1065 = vsel %vm472, %v1060, %v1062
      %v1066 = vsel %vm472, %v1062, %v1064
      %1070 = vrot.lane.b32.xlu0 %v1033, 109
      %v1071 = vpop.permute.xlu0 %1070
      %1072 = vrot.lane.b32.xlu0 %v1028, 109
      %v1073 = vpop.permute.xlu0 %1072
      %1074 = vrot.lane.b32.xlu0 %v1034, 109
      %v1075 = vpop.permute.xlu0 %1074
      %v1076 = vsel %vm484, %v1071, %v1073
      %v1077 = vsel %vm484, %v1073, %v1075
      %1081 = vrot.lane.b32.xlu0 %v1033, 108
      %v1082 = vpop.permute.xlu0 %1081
      %1083 = vrot.lane.b32.xlu0 %v1028, 108
      %v1084 = vpop.permute.xlu0 %1083
      %1085 = vrot.lane.b32.xlu0 %v1034, 108
      %v1086 = vpop.permute.xlu0 %1085
      %v1087 = vsel %vm496, %v1082, %v1084
      %v1088 = vsel %vm496, %v1084, %v1086
      %1092 = vrot.lane.b32.xlu0 %v1033, 92
      %v1093 = vpop.permute.xlu0 %1092
      %1094 = vrot.lane.b32.xlu0 %v1028, 92
      %v1095 = vpop.permute.xlu0 %1094
      %1096 = vrot.lane.b32.xlu0 %v1034, 92
      %v1097 = vpop.permute.xlu0 %1096
      %v1098 = vsel %vm508, %v1093, %v1095
      %v1099 = vsel %vm508, %v1095, %v1097
      %1103 = vrot.lane.b32.xlu0 %v1033, 91
      %v1104 = vpop.permute.xlu0 %1103
      %1105 = vrot.lane.b32.xlu0 %v1028, 91
      %v1106 = vpop.permute.xlu0 %1105
      %1107 = vrot.lane.b32.xlu0 %v1034, 91
      %v1108 = vpop.permute.xlu0 %1107
      %v1109 = vsel %vm520, %v1104, %v1106
      %v1110 = vsel %vm520, %v1106, %v1108
      %1114 = vrot.lane.b32.xlu0 %v1033, 90
      %v1115 = vpop.permute.xlu0 %1114
      %1116 = vrot.lane.b32.xlu0 %v1028, 90
      %v1117 = vpop.permute.xlu0 %1116
      %1118 = vrot.lane.b32.xlu0 %v1034, 90
      %v1119 = vpop.permute.xlu0 %1118
      %v1120 = vsel %vm532, %v1115, %v1117
      %v1121 = vsel %vm532, %v1117, %v1119
      %1126 = vset.pattern.permute.xlu0 0
      %1127 = vperm.xlu0 %1126, %v1018
      %v1128 = vpop.permute.xlu0 %1127
      %vm1130 = vcmask 588800
      %v1132 = vsel %vm1130, %v1017, 0
      %1134 = vmatprep.subr.mxu0 0.0
      %1135 = vmatpush1.msra.mxu0 0.0
      %1136 = vmatprep.subr.mxu0 0.0
      %1137 = vmatpush1.msra.mxu0 0.0
      %1138 = vmatprep.subr.mxu0 0.0
      %1139 = vmatpush1.msra.mxu0 0.0
      %1140 = vmatprep.subr.mxu0 0.0
      %1141 = vmatpush1.msra.mxu0 0.0
      %1142 = vmatprep.subr.mxu0 0.0
      %1143 = vmatpush1.msra.mxu0 0.0
      %1144 = vmatprep.subr.mxu0 0.0
      %1145 = vmatpush1.msra.mxu0 0.0
      %1146 = vmatprep.subr.mxu0 0.0
      %1147 = vmatpush1.msra.mxu0 0.0
      %1148 = vmatprep.subr.mxu0 %v1121
      %1149 = vmatpush1.msra.mxu0 %v1120
      %1150 = vmatprep.subr.mxu0 %v1110
      %1151 = vmatpush1.msra.mxu0 %v1109
      %1152 = vmatprep.subr.mxu0 %v1099
      %1153 = vmatpush1.msra.mxu0 %v1098
      %1154 = vmatprep.subr.mxu0 %v1088
      %1155 = vmatpush1.msra.mxu0 %v1087
      %1156 = vmatprep.subr.mxu0 %v1077
      %1157 = vmatpush1.msra.mxu0 %v1076
      %1158 = vmatprep.subr.mxu0 %v1066
      %1159 = vmatpush1.msra.mxu0 %v1065
      %1160 = vmatprep.subr.mxu0 %v1055
      %1161 = vmatpush1.msra.mxu0 %v1054
      %1162 = vmatprep.subr.mxu0 %v1044
      %1163 = vmatpush1.msra.mxu0 %v1043
      %1164 = vmatprep.subr.mxu0 %v1028
      %1165 = vmatpush1.msra.mxu0 %v1033
      %1166 = vmatprep.subr.mxu0 0.0
      %1167 = vmatpush2.msra.mxu0 0.0
      %1168 = vmatprep.subr.mxu0 0.0
      %1169 = vmatpush2.msra.mxu0 0.0
      %1170 = vmatprep.subr.mxu0 0.0
      %1171 = vmatpush2.msra.mxu0 0.0
      %1172 = vmatprep.subr.mxu0 0.0
      %1173 = vmatpush2.msra.mxu0 0.0
      %1174 = vmatprep.subr.mxu0 0.0
      %1175 = vmatpush2.msra.mxu0 0.0
      %1176 = vmatprep.subr.mxu0 0.0
      %1177 = vmatpush2.msra.mxu0 0.0
      %1178 = vmatprep.subr.mxu0 0.0
      %1179 = vmatpush2.msra.mxu0 0.0
      %1180 = vmatprep.subr.mxu0 0.0
      %1181 = vmatpush2.msra.mxu0 0.0
      %1182 = vmatprep.subr.mxu0 0.0
      %1183 = vmatpush2.msra.mxu0 0.0
      %1184 = vmatprep.subr.mxu0 0.0
      %1185 = vmatpush2.msra.mxu0 0.0
      %1186 = vmatprep.subr.mxu0 0.0
      %1187 = vmatpush2.msra.mxu0 0.0
      %1188 = vmatprep.subr.mxu0 0.0
      %1189 = vmatpush2.msra.mxu0 0.0
      %1190 = vmatprep.subr.mxu0 0.0
      %1191 = vmatpush2.msra.mxu0 0.0
      %1192 = vmatprep.subr.mxu0 0.0
      %1193 = vmatpush2.msra.mxu0 0.0
      %1194 = vmatprep.subr.mxu0 0.0
      %1195 = vmatpush2.msra.mxu0 0.0
      %1196 = vmatprep.subr.mxu0 0.0
      %1197 = vmatpush2.msra.mxu0 0.0
      %1198 = vmatprep.mubr.f32.mxu0 0.0
      %1199 = vmatmul.mubr.f32.gmra.mxu0 %v1132
      %v1200 = vpop.f32.mrf.mxu0
      %v1201 = vadd.f32 %v1128, %v1200
      %v1202 = vpop.f32.mrf.mxu0
      %v1203 = vadd.f32 %v1128, %v1202
      %1204 = vdwg.mxu0
      %1205 = vmatprep.subr.mxu0 0.0
      %1206 = vmatpush1.msra.mxu0 0.0
      %1207 = vmatprep.subr.mxu0 0.0
      %1208 = vmatpush1.msra.mxu0 0.0
      %1209 = vmatprep.subr.mxu0 0.0
      %1210 = vmatpush1.msra.mxu0 0.0
      %1211 = vmatprep.subr.mxu0 0.0
      %1212 = vmatpush1.msra.mxu0 0.0
      %1213 = vmatprep.subr.mxu0 0.0
      %1214 = vmatpush1.msra.mxu0 0.0
      %1215 = vmatprep.subr.mxu0 0.0
      %1216 = vmatpush1.msra.mxu0 0.0
      %1217 = vmatprep.subr.mxu0 0.0
      %1218 = vmatpush1.msra.mxu0 0.0
      %1219 = vmatprep.subr.mxu0 0.0
      %1220 = vmatpush1.msra.mxu0 %v1119
      %1221 = vmatprep.subr.mxu0 0.0
      %1222 = vmatpush1.msra.mxu0 %v1108
      %1223 = vmatprep.subr.mxu0 0.0
      %1224 = vmatpush1.msra.mxu0 %v1097
      %1225 = vmatprep.subr.mxu0 0.0
      %1226 = vmatpush1.msra.mxu0 %v1086
      %1227 = vmatprep.subr.mxu0 0.0
      %1228 = vmatpush1.msra.mxu0 %v1075
      %1229 = vmatprep.subr.mxu0 0.0
      %1230 = vmatpush1.msra.mxu0 %v1064
      %1231 = vmatprep.subr.mxu0 0.0
      %1232 = vmatpush1.msra.mxu0 %v1053
      %1233 = vmatprep.subr.mxu0 0.0
      %1234 = vmatpush1.msra.mxu0 %v1042
      %1235 = vmatprep.subr.mxu0 0.0
      %1236 = vmatpush1.msra.mxu0 %v1034
      %1237 = vmatprep.subr.mxu0 0.0
      %1238 = vmatpush2.msra.mxu0 0.0
      %1239 = vmatprep.subr.mxu0 0.0
      %1240 = vmatpush2.msra.mxu0 0.0
      %1241 = vmatprep.subr.mxu0 0.0
      %1242 = vmatpush2.msra.mxu0 0.0
      %1243 = vmatprep.subr.mxu0 0.0
      %1244 = vmatpush2.msra.mxu0 0.0
      %1245 = vmatprep.subr.mxu0 0.0
      %1246 = vmatpush2.msra.mxu0 0.0
      %1247 = vmatprep.subr.mxu0 0.0
      %1248 = vmatpush2.msra.mxu0 0.0
      %1249 = vmatprep.subr.mxu0 0.0
      %1250 = vmatpush2.msra.mxu0 0.0
      %1251 = vmatprep.subr.mxu0 0.0
      %1252 = vmatpush2.msra.mxu0 0.0
      %1253 = vmatprep.subr.mxu0 0.0
      %1254 = vmatpush2.msra.mxu0 0.0
      %1255 = vmatprep.subr.mxu0 0.0
      %1256 = vmatpush2.msra.mxu0 0.0
      %1257 = vmatprep.subr.mxu0 0.0
      %1258 = vmatpush2.msra.mxu0 0.0
      %1259 = vmatprep.subr.mxu0 0.0
      %1260 = vmatpush2.msra.mxu0 0.0
      %1261 = vmatprep.subr.mxu0 0.0
      %1262 = vmatpush2.msra.mxu0 0.0
      %1263 = vmatprep.subr.mxu0 0.0
      %1264 = vmatpush2.msra.mxu0 0.0
      %1265 = vmatprep.subr.mxu0 0.0
      %1266 = vmatpush2.msra.mxu0 0.0
      %1267 = vmatprep.subr.mxu0 0.0
      %1268 = vmatpush2.msra.mxu0 0.0
      %1269 = vmatprep.mubr.f32.mxu0 0.0
      %1270 = vmatmul.mubr.f32.gmra.mxu0 %v1132
      %v1271 = vpop.f32.mrf.mxu0
      %v1272 = vadd.f32 %v1128, %v1271
      %v1273 = vpop.f32.mrf.mxu0
      %1274 = vdwg.mxu0
      %v1275 = vmax.f32 %v1201, 0.0
      %v1276 = vmax.f32 %v1203, 0.0
      %v1277 = vmax.f32 %v1272, 0.0
      %v1278 = vmul.f32 %v711, %v1275
      %v1279 = vmul.f32 %v715, %v1276
      %v1280 = vmul.f32 %v719, %v1277
      %v1281 = vld [vmem:[%s8] sm:$0xf]
      %v1282 = vld [vmem:[%s9] sm:$0xf]
      %1286 = vrot.lane.b32.xlu0 %v1278, 19
      %v1287 = vpop.permute.xlu0 %1286
      %1288 = vrot.lane.b32.xlu0 %v1279, 19
      %v1289 = vpop.permute.xlu0 %1288
      %1290 = vrot.lane.b32.xlu0 %v1280, 19
      %v1291 = vpop.permute.xlu0 %1290
      %v1292 = vsel %vm428, %v1287, %v1289
      %v1293 = vsel %vm428, %v1289, %v1291
      %v1297 = vsel %vm428, 0.0, %v1287
      %v1298 = vsel %vm435, %v1293, 0.0
      %v1301 = vrot.slane %v1297, 4
      %v1302 = vrot.slane %v1292, 4
      %v1303 = vrot.slane %v1298, 4
      %1304 = vrot.lane.b32.xlu0 %v1301, 127
      %v1305 = vpop.permute.xlu0 %1304
      %1306 = vrot.lane.b32.xlu0 %v1302, 127
      %v1307 = vpop.permute.xlu0 %1306
      %1308 = vrot.lane.b32.xlu0 %v1303, 127
      %v1309 = vpop.permute.xlu0 %1308
      %v1310 = vsel %vm448, %v1305, %v1307
      %v1311 = vsel %vm448, %v1307, %v1309
      %1315 = vrot.lane.b32.xlu0 %v1297, 126
      %v1316 = vpop.permute.xlu0 %1315
      %1317 = vrot.lane.b32.xlu0 %v1292, 126
      %v1318 = vpop.permute.xlu0 %1317
      %1319 = vrot.lane.b32.xlu0 %v1298, 126
      %v1320 = vpop.permute.xlu0 %1319
      %v1321 = vsel %vm460, %v1316, %v1318
      %v1322 = vsel %vm460, %v1318, %v1320
      %1326 = vrot.lane.b32.xlu0 %v1301, 110
      %v1327 = vpop.permute.xlu0 %1326
      %1328 = vrot.lane.b32.xlu0 %v1302, 110
      %v1329 = vpop.permute.xlu0 %1328
      %1330 = vrot.lane.b32.xlu0 %v1303, 110
      %v1331 = vpop.permute.xlu0 %1330
      %v1332 = vsel %vm472, %v1327, %v1329
      %v1333 = vsel %vm472, %v1329, %v1331
      %1337 = vrot.lane.b32.xlu0 %v1297, 109
      %v1338 = vpop.permute.xlu0 %1337
      %1339 = vrot.lane.b32.xlu0 %v1292, 109
      %v1340 = vpop.permute.xlu0 %1339
      %1341 = vrot.lane.b32.xlu0 %v1298, 109
      %v1342 = vpop.permute.xlu0 %1341
      %v1343 = vsel %vm484, %v1338, %v1340
      %v1344 = vsel %vm484, %v1340, %v1342
      %1348 = vrot.lane.b32.xlu0 %v1301, 108
      %v1349 = vpop.permute.xlu0 %1348
      %1350 = vrot.lane.b32.xlu0 %v1302, 108
      %v1351 = vpop.permute.xlu0 %1350
      %1352 = vrot.lane.b32.xlu0 %v1303, 108
      %v1353 = vpop.permute.xlu0 %1352
      %v1354 = vsel %vm496, %v1349, %v1351
      %v1355 = vsel %vm496, %v1351, %v1353
      %1359 = vrot.lane.b32.xlu0 %v1297, 92
      %v1360 = vpop.permute.xlu0 %1359
      %1361 = vrot.lane.b32.xlu0 %v1292, 92
      %v1362 = vpop.permute.xlu0 %1361
      %1363 = vrot.lane.b32.xlu0 %v1298, 92
      %v1364 = vpop.permute.xlu0 %1363
      %v1365 = vsel %vm508, %v1360, %v1362
      %v1366 = vsel %vm508, %v1362, %v1364
      %1370 = vrot.lane.b32.xlu0 %v1301, 91
      %v1371 = vpop.permute.xlu0 %1370
      %1372 = vrot.lane.b32.xlu0 %v1302, 91
      %v1373 = vpop.permute.xlu0 %1372
      %1374 = vrot.lane.b32.xlu0 %v1303, 91
      %v1375 = vpop.permute.xlu0 %1374
      %v1376 = vsel %vm520, %v1371, %v1373
      %v1377 = vsel %vm520, %v1373, %v1375
      %1381 = vrot.lane.b32.xlu0 %v1297, 90
      %v1382 = vpop.permute.xlu0 %1381
      %1383 = vrot.lane.b32.xlu0 %v1292, 90
      %v1384 = vpop.permute.xlu0 %1383
      %1385 = vrot.lane.b32.xlu0 %v1298, 90
      %v1386 = vpop.permute.xlu0 %1385
      %v1387 = vsel %vm532, %v1382, %v1384
      %v1388 = vsel %vm532, %v1384, %v1386
      %v1389 = vsel %vm535, %v1297, %v1310
      %v1390 = vsel %vm535, %v1292, %v1311
      %v1391 = vsel %vm535, %v1298, %v1309
      %v1392 = vsel %vm535, %v1321, %v1332
      %v1393 = vsel %vm535, %v1322, %v1333
      %v1394 = vsel %vm535, %v1320, %v1331
      %v1395 = vsel %vm535, %v1343, %v1354
      %v1396 = vsel %vm535, %v1344, %v1355
      %v1397 = vsel %vm535, %v1342, %v1353
      %v1398 = vsel %vm535, %v1365, %v1376
      %v1399 = vsel %vm535, %v1366, %v1377
      %v1400 = vsel %vm535, %v1364, %v1375
      %1402 = vset.pattern.permute.xlu0 0
      %1403 = vperm.xlu0 %1402, %v1282
      %v1404 = vpop.permute.xlu0 %1403
      %v1407 = vsel %vm553, %v1281, 0
      %v1409 = vsel %vm535, %v1387, 0
      %v1411 = vsel %vm535, %v1388, 0
      %v1413 = vsel %vm535, %v1386, 0
      %1415 = vmatprep.subr.mxu0 0.0
      %1416 = vmatpush1.msra.mxu0 0.0
      %1417 = vmatprep.subr.mxu0 0.0
      %1418 = vmatpush1.msra.mxu0 0.0
      %1419 = vmatprep.subr.mxu0 0.0
      %1420 = vmatpush1.msra.mxu0 0.0
      %1421 = vmatprep.subr.mxu0 0.0
      %1422 = vmatpush1.msra.mxu0 0.0
      %1423 = vmatprep.subr.mxu0 0.0
      %1424 = vmatpush1.msra.mxu0 0.0
      %1425 = vmatprep.subr.mxu0 0.0
      %1426 = vmatpush1.msra.mxu0 0.0
      %1427 = vmatprep.subr.mxu0 0.0
      %1428 = vmatpush1.msra.mxu0 0.0
      %1429 = vmatprep.subr.mxu0 0.0
      %1430 = vmatpush1.msra.mxu0 0.0
      %1431 = vmatprep.subr.mxu0 0.0
      %1432 = vmatpush1.msra.mxu0 0.0
      %1433 = vmatprep.subr.mxu0 0.0
      %1434 = vmatpush1.msra.mxu0 0.0
      %1435 = vmatprep.subr.mxu0 0.0
      %1436 = vmatpush1.msra.mxu0 0.0
      %1437 = vmatprep.subr.mxu0 %v1411
      %1438 = vmatpush1.msra.mxu0 %v1409
      %1439 = vmatprep.subr.mxu0 %v1399
      %1440 = vmatpush1.msra.mxu0 %v1398
      %1441 = vmatprep.subr.mxu0 %v1396
      %1442 = vmatpush1.msra.mxu0 %v1395
      %1443 = vmatprep.subr.mxu0 %v1393
      %1444 = vmatpush1.msra.mxu0 %v1392
      %1445 = vmatprep.subr.mxu0 %v1390
      %1446 = vmatpush1.msra.mxu0 %v1389
      %1447 = vmatprep.subr.mxu0 0.0
      %1448 = vmatpush2.msra.mxu0 0.0
      %1449 = vmatprep.subr.mxu0 0.0
      %1450 = vmatpush2.msra.mxu0 0.0
      %1451 = vmatprep.subr.mxu0 0.0
      %1452 = vmatpush2.msra.mxu0 0.0
      %1453 = vmatprep.subr.mxu0 0.0
      %1454 = vmatpush2.msra.mxu0 0.0
      %1455 = vmatprep.subr.mxu0 0.0
      %1456 = vmatpush2.msra.mxu0 0.0
      %1457 = vmatprep.subr.mxu0 0.0
      %1458 = vmatpush2.msra.mxu0 0.0
      %1459 = vmatprep.subr.mxu0 0.0
      %1460 = vmatpush2.msra.mxu0 0.0
      %1461 = vmatprep.subr.mxu0 0.0
      %1462 = vmatpush2.msra.mxu0 0.0
      %1463 = vmatprep.subr.mxu0 0.0
      %1464 = vmatpush2.msra.mxu0 0.0
      %1465 = vmatprep.subr.mxu0 0.0
      %1466 = vmatpush2.msra.mxu0 0.0
      %1467 = vmatprep.subr.mxu0 0.0
      %1468 = vmatpush2.msra.mxu0 0.0
      %1469 = vmatprep.subr.mxu0 0.0
      %1470 = vmatpush2.msra.mxu0 0.0
      %1471 = vmatprep.subr.mxu0 0.0
      %1472 = vmatpush2.msra.mxu0 0.0
      %1473 = vmatprep.subr.mxu0 0.0
      %1474 = vmatpush2.msra.mxu0 0.0
      %1475 = vmatprep.subr.mxu0 0.0
      %1476 = vmatpush2.msra.mxu0 0.0
      %1477 = vmatprep.subr.mxu0 0.0
      %1478 = vmatpush2.msra.mxu0 0.0
      %1479 = vmatprep.mubr.f32.mxu0 0.0
      %1480 = vmatmul.mubr.f32.gmra.mxu0 %v1407
      %v1481 = vpop.f32.mrf.mxu0
      %v1482 = vadd.f32 %v1404, %v1481
      %v1483 = vpop.f32.mrf.mxu0
      %v1484 = vadd.f32 %v1404, %v1483
      %1485 = vdwg.mxu0
      %1486 = vmatprep.subr.mxu0 0.0
      %1487 = vmatpush1.msra.mxu0 0.0
      %1488 = vmatprep.subr.mxu0 0.0
      %1489 = vmatpush1.msra.mxu0 0.0
      %1490 = vmatprep.subr.mxu0 0.0
      %1491 = vmatpush1.msra.mxu0 0.0
      %1492 = vmatprep.subr.mxu0 0.0
      %1493 = vmatpush1.msra.mxu0 0.0
      %1494 = vmatprep.subr.mxu0 0.0
      %1495 = vmatpush1.msra.mxu0 0.0
      %1496 = vmatprep.subr.mxu0 0.0
      %1497 = vmatpush1.msra.mxu0 0.0
      %1498 = vmatprep.subr.mxu0 0.0
      %1499 = vmatpush1.msra.mxu0 0.0
      %1500 = vmatprep.subr.mxu0 0.0
      %1501 = vmatpush1.msra.mxu0 0.0
      %1502 = vmatprep.subr.mxu0 0.0
      %1503 = vmatpush1.msra.mxu0 0.0
      %1504 = vmatprep.subr.mxu0 0.0
      %1505 = vmatpush1.msra.mxu0 0.0
      %1506 = vmatprep.subr.mxu0 0.0
      %1507 = vmatpush1.msra.mxu0 0.0
      %1508 = vmatprep.subr.mxu0 0.0
      %1509 = vmatpush1.msra.mxu0 %v1413
      %1510 = vmatprep.subr.mxu0 0.0
      %1511 = vmatpush1.msra.mxu0 %v1400
      %1512 = vmatprep.subr.mxu0 0.0
      %1513 = vmatpush1.msra.mxu0 %v1397
      %1514 = vmatprep.subr.mxu0 0.0
      %1515 = vmatpush1.msra.mxu0 %v1394
      %1516 = vmatprep.subr.mxu0 0.0
      %1517 = vmatpush1.msra.mxu0 %v1391
      %1518 = vmatprep.subr.mxu0 0.0
      %1519 = vmatpush2.msra.mxu0 0.0
      %1520 = vmatprep.subr.mxu0 0.0
      %1521 = vmatpush2.msra.mxu0 0.0
      %1522 = vmatprep.subr.mxu0 0.0
      %1523 = vmatpush2.msra.mxu0 0.0
      %1524 = vmatprep.subr.mxu0 0.0
      %1525 = vmatpush2.msra.mxu0 0.0
      %1526 = vmatprep.subr.mxu0 0.0
      %1527 = vmatpush2.msra.mxu0 0.0
      %1528 = vmatprep.subr.mxu0 0.0
      %1529 = vmatpush2.msra.mxu0 0.0
      %1530 = vmatprep.subr.mxu0 0.0
      %1531 = vmatpush2.msra.mxu0 0.0
      %1532 = vmatprep.subr.mxu0 0.0
      %1533 = vmatpush2.msra.mxu0 0.0
      %1534 = vmatprep.subr.mxu0 0.0
      %1535 = vmatpush2.msra.mxu0 0.0
      %1536 = vmatprep.subr.mxu0 0.0
      %1537 = vmatpush2.msra.mxu0 0.0
      %1538 = vmatprep.subr.mxu0 0.0
      %1539 = vmatpush2.msra.mxu0 0.0
      %1540 = vmatprep.subr.mxu0 0.0
      %1541 = vmatpush2.msra.mxu0 0.0
      %1542 = vmatprep.subr.mxu0 0.0
      %1543 = vmatpush2.msra.mxu0 0.0
      %1544 = vmatprep.subr.mxu0 0.0
      %1545 = vmatpush2.msra.mxu0 0.0
      %1546 = vmatprep.subr.mxu0 0.0
      %1547 = vmatpush2.msra.mxu0 0.0
      %1548 = vmatprep.subr.mxu0 0.0
      %1549 = vmatpush2.msra.mxu0 0.0
      %1550 = vmatprep.mubr.f32.mxu0 0.0
      %1551 = vmatmul.mubr.f32.gmra.mxu0 %v1407
      %v1552 = vpop.f32.mrf.mxu0
      %v1553 = vadd.f32 %v1404, %v1552
      %v1554 = vpop.f32.mrf.mxu0
      %1555 = vdwg.mxu0
      %v1556 = vmul.f32 %v711, %v1482
      %v1557 = vmul.f32 %v715, %v1484
      %v1558 = vmul.f32 %v719, %v1553
      %v1559 = vld [vmem:[%s10] sm:$0xf]
      %v1560 = vld [vmem:[%s11] sm:$0xf]
      %1562 = vset.pattern.permute.xlu0 0
      %1563 = vperm.xlu0 %1562, %v1560
      %v1564 = vpop.permute.xlu0 %1563
      %vm1566 = vcmask 97280
      %v1568 = vsel %vm1566, %v1559, 0
      %v1571 = vsel %vm535, %v1556, 0
      %v1574 = vsel %vm535, %v1557, 0
      %v1577 = vsel %vm535, %v1558, 0
      %1579 = vmatprep.subr.mxu0 0.0
      %1580 = vmatpush1.msra.mxu0 0.0
      %1581 = vmatprep.subr.mxu0 0.0
      %1582 = vmatpush1.msra.mxu0 0.0
      %1583 = vmatprep.subr.mxu0 0.0
      %1584 = vmatpush1.msra.mxu0 0.0
      %1585 = vmatprep.subr.mxu0 0.0
      %1586 = vmatpush1.msra.mxu0 0.0
      %1587 = vmatprep.subr.mxu0 0.0
      %1588 = vmatpush1.msra.mxu0 0.0
      %1589 = vmatprep.subr.mxu0 0.0
      %1590 = vmatpush1.msra.mxu0 0.0
      %1591 = vmatprep.subr.mxu0 0.0
      %1592 = vmatpush1.msra.mxu0 0.0
      %1593 = vmatprep.subr.mxu0 0.0
      %1594 = vmatpush1.msra.mxu0 0.0
      %1595 = vmatprep.subr.mxu0 0.0
      %1596 = vmatpush1.msra.mxu0 0.0
      %1597 = vmatprep.subr.mxu0 0.0
      %1598 = vmatpush1.msra.mxu0 0.0
      %1599 = vmatprep.subr.mxu0 0.0
      %1600 = vmatpush1.msra.mxu0 0.0
      %1601 = vmatprep.subr.mxu0 0.0
      %1602 = vmatpush1.msra.mxu0 0.0
      %1603 = vmatprep.subr.mxu0 0.0
      %1604 = vmatpush1.msra.mxu0 0.0
      %1605 = vmatprep.subr.mxu0 0.0
      %1606 = vmatpush1.msra.mxu0 0.0
      %1607 = vmatprep.subr.mxu0 %v1574
      %1608 = vmatpush1.msra.mxu0 %v1571
      %1609 = vmatprep.subr.mxu0 %v1015
      %1610 = vmatpush1.msra.mxu0 %v1014
      %1611 = vmatprep.subr.mxu0 0.0
      %1612 = vmatpush2.msra.mxu0 0.0
      %1613 = vmatprep.subr.mxu0 0.0
      %1614 = vmatpush2.msra.mxu0 0.0
      %1615 = vmatprep.subr.mxu0 0.0
      %1616 = vmatpush2.msra.mxu0 0.0
      %1617 = vmatprep.subr.mxu0 0.0
      %1618 = vmatpush2.msra.mxu0 0.0
      %1619 = vmatprep.subr.mxu0 0.0
      %1620 = vmatpush2.msra.mxu0 0.0
      %1621 = vmatprep.subr.mxu0 0.0
      %1622 = vmatpush2.msra.mxu0 0.0
      %1623 = vmatprep.subr.mxu0 0.0
      %1624 = vmatpush2.msra.mxu0 0.0
      %1625 = vmatprep.subr.mxu0 0.0
      %1626 = vmatpush2.msra.mxu0 0.0
      %1627 = vmatprep.subr.mxu0 0.0
      %1628 = vmatpush2.msra.mxu0 0.0
      %1629 = vmatprep.subr.mxu0 0.0
      %1630 = vmatpush2.msra.mxu0 0.0
      %1631 = vmatprep.subr.mxu0 0.0
      %1632 = vmatpush2.msra.mxu0 0.0
      %1633 = vmatprep.subr.mxu0 0.0
      %1634 = vmatpush2.msra.mxu0 0.0
      %1635 = vmatprep.subr.mxu0 0.0
      %1636 = vmatpush2.msra.mxu0 0.0
      %1637 = vmatprep.subr.mxu0 0.0
      %1638 = vmatpush2.msra.mxu0 0.0
      %1639 = vmatprep.subr.mxu0 0.0
      %1640 = vmatpush2.msra.mxu0 0.0
      %1641 = vmatprep.subr.mxu0 0.0
      %1642 = vmatpush2.msra.mxu0 0.0
      %1643 = vmatprep.mubr.f32.mxu0 0.0
      %1644 = vmatmul.mubr.f32.gmra.mxu0 %v1568
      %v1645 = vpop.f32.mrf.mxu0
      %v1646 = vadd.f32 %v1564, %v1645
      %v1647 = vpop.f32.mrf.mxu0
      %v1648 = vadd.f32 %v1564, %v1647
      %1649 = vdwg.mxu0
      %1650 = vmatprep.subr.mxu0 0.0
      %1651 = vmatpush1.msra.mxu0 0.0
      %1652 = vmatprep.subr.mxu0 0.0
      %1653 = vmatpush1.msra.mxu0 0.0
      %1654 = vmatprep.subr.mxu0 0.0
      %1655 = vmatpush1.msra.mxu0 0.0
      %1656 = vmatprep.subr.mxu0 0.0
      %1657 = vmatpush1.msra.mxu0 0.0
      %1658 = vmatprep.subr.mxu0 0.0
      %1659 = vmatpush1.msra.mxu0 0.0
      %1660 = vmatprep.subr.mxu0 0.0
      %1661 = vmatpush1.msra.mxu0 0.0
      %1662 = vmatprep.subr.mxu0 0.0
      %1663 = vmatpush1.msra.mxu0 0.0
      %1664 = vmatprep.subr.mxu0 0.0
      %1665 = vmatpush1.msra.mxu0 0.0
      %1666 = vmatprep.subr.mxu0 0.0
      %1667 = vmatpush1.msra.mxu0 0.0
      %1668 = vmatprep.subr.mxu0 0.0
      %1669 = vmatpush1.msra.mxu0 0.0
      %1670 = vmatprep.subr.mxu0 0.0
      %1671 = vmatpush1.msra.mxu0 0.0
      %1672 = vmatprep.subr.mxu0 0.0
      %1673 = vmatpush1.msra.mxu0 0.0
      %1674 = vmatprep.subr.mxu0 0.0
      %1675 = vmatpush1.msra.mxu0 0.0
      %1676 = vmatprep.subr.mxu0 0.0
      %1677 = vmatpush1.msra.mxu0 0.0
      %1678 = vmatprep.subr.mxu0 0.0
      %1679 = vmatpush1.msra.mxu0 %v1577
      %1680 = vmatprep.subr.mxu0 0.0
      %1681 = vmatpush1.msra.mxu0 %v1016
      %1682 = vmatprep.subr.mxu0 0.0
      %1683 = vmatpush2.msra.mxu0 0.0
      %1684 = vmatprep.subr.mxu0 0.0
      %1685 = vmatpush2.msra.mxu0 0.0
      %1686 = vmatprep.subr.mxu0 0.0
      %1687 = vmatpush2.msra.mxu0 0.0
      %1688 = vmatprep.subr.mxu0 0.0
      %1689 = vmatpush2.msra.mxu0 0.0
      %1690 = vmatprep.subr.mxu0 0.0
      %1691 = vmatpush2.msra.mxu0 0.0
      %1692 = vmatprep.subr.mxu0 0.0
      %1693 = vmatpush2.msra.mxu0 0.0
      %1694 = vmatprep.subr.mxu0 0.0
      %1695 = vmatpush2.msra.mxu0 0.0
      %1696 = vmatprep.subr.mxu0 0.0
      %1697 = vmatpush2.msra.mxu0 0.0
      %1698 = vmatprep.subr.mxu0 0.0
      %1699 = vmatpush2.msra.mxu0 0.0
      %1700 = vmatprep.subr.mxu0 0.0
      %1701 = vmatpush2.msra.mxu0 0.0
      %1702 = vmatprep.subr.mxu0 0.0
      %1703 = vmatpush2.msra.mxu0 0.0
      %1704 = vmatprep.subr.mxu0 0.0
      %1705 = vmatpush2.msra.mxu0 0.0
      %1706 = vmatprep.subr.mxu0 0.0
      %1707 = vmatpush2.msra.mxu0 0.0
      %1708 = vmatprep.subr.mxu0 0.0
      %1709 = vmatpush2.msra.mxu0 0.0
      %1710 = vmatprep.subr.mxu0 0.0
      %1711 = vmatpush2.msra.mxu0 0.0
      %1712 = vmatprep.subr.mxu0 0.0
      %1713 = vmatpush2.msra.mxu0 0.0
      %1714 = vmatprep.mubr.f32.mxu0 0.0
      %1715 = vmatmul.mubr.f32.gmra.mxu0 %v1568
      %v1716 = vpop.f32.mrf.mxu0
      %v1717 = vadd.f32 %v1564, %v1716
      %v1718 = vpop.f32.mrf.mxu0
      %1719 = vdwg.mxu0
      %v1720 = vadd.f32 %v1646, %v415
      %v1721 = vadd.f32 %v1648, %v421
      %v1722 = vadd.f32 %v1717, %v416
      %v1725 = vcombine.low %v1720, %v1721
      %1727 = vst [vmem:[%s413] sm:$0xff] %v1725
      %vm1728 = vcmask 551936
      %1729 = vst.msk [vmem:[%s413 + $0x8] sm:$0xf] %vm1728, %v1722
      %p1730 = scmp.lt.s32.totalorder %s23, 1
      %s1731 = scalar_select %p1730, %s23, 1
      %s1732 = smul.addr %s1731, 3
      %s1733 = smul.addr %s1732, 4
      %s1734 = scalar_lea.vmem %s12, %s1733
      // Predicated region
      $region69: #{rb_forward.1} parent=67 // pred_check
        %p1735 = pneg %p298
      $region70: #{rb_forward.1} parent=67 // pred_check_branch
        %1737 = sbr.rel (%p1735) target = $region72
      $region71: #{rb_forward.1} parent=67 // pred_region
        _
      $region72: #{rb_forward.1} parent=67 // pred_fallthru
        _
    $region68: #{rb_forward.1} parent=5 // pred_fallthru
      _
    %p1738 = scmp.le.s32.totalorder 2, %s18
    // Predicated region
    $region73: #{rb_forward.1} parent=5 // pred_check
      %p1739 = pneg %p1738
    $region74: #{rb_forward.1} parent=5 // pred_check_branch
      %1741 = sbr.rel (%p1739) target = $region76
    $region75: #{rb_forward.1} parent=5 // pred_region
      %s1742 = ssub.s32 %s18, 2
      // Predicated region
      $region77: #{rb_forward.1} parent=75 // pred_check
        %p1743 = pneg %p304
      $region78: #{rb_forward.1} parent=75 // pred_check_branch
        %1745 = sbr.rel (%p1743) target = $region80
      $region79: #{rb_forward.1} parent=75 // pred_region
        %p1746 = scmp.lt.s32.totalorder %s24, 1
        %s1747 = scalar_select %p1746, %s24, 1
        %s1748 = smul.addr %s1747, 3
        %s1749 = smul.addr %s1748, 4
        %s1750 = scalar_lea.vmem %s12, %s1749
      $region80: #{rb_forward.1} parent=75 // pred_fallthru
        _
    $region76: #{rb_forward.1} parent=5 // pred_fallthru
      _
  $region6: #{rb_forward.1} parent=0 // loop_footer
    %s22 = sadd.s32 1, %s18
  $region7: #{rb_forward.1} parent=0 // loop_footer_branch
    %17 = sbr.rel target = $region3
  $region8: #{rb_forward.1} parent=0 // loop_exit
    _

</llo_original>
